<compile_context>
chip_gen: v5e
topology: v5e:2x2
jax: 0.10.0
libtpu: 0.0.40
codegen_flags: <defaults>
</compile_context>

<pallas_src>
import functools

import jax
import jax.numpy as jnp
from jax.experimental import pallas as pl
from jax.experimental.pallas import tpu as pltpu


def _round_up(a, b):
    return (a + b - 1) // b * b


def _pick_tile(dim, align, max_tile):
    """Pad `dim` to a multiple of `align`; return (tile, padded_dim) where tile
    is the largest multiple of `align` <= max_tile that divides padded_dim."""
    padded = _round_up(dim, align)
    cap = min(max_tile, padded)
    cap -= cap % align
    tile = align
    for cand in range(cap, align - 1, -align):
        if padded % cand == 0:
            tile = cand
            break
    return tile, padded


# --------------------------------------------------------------------------
# Pallas kernels
# --------------------------------------------------------------------------
def _mm_bn_kernel(*refs, relu, has_res):
    """Fused (X @ W) * scale + bias [+ residual] [-> ReLU], f32 accumulation."""
    if has_res:
        x_ref, w_ref, s_ref, b_ref, r_ref, o_ref, acc_ref = refs
    else:
        x_ref, w_ref, s_ref, b_ref, o_ref, acc_ref = refs
        r_ref = None
    k = pl.program_id(2)

    @pl.when(k == 0)
    def _():
        acc_ref[...] = jnp.zeros_like(acc_ref)

    acc_ref[...] += jnp.dot(x_ref[...], w_ref[...],
                            preferred_element_type=jnp.float32)

    @pl.when(k == pl.num_programs(2) - 1)
    def _():
        y = acc_ref[...] * s_ref[...] + b_ref[...]
        if r_ref is not None:
            y = y + r_ref[...].astype(jnp.float32)
        if relu:
            y = jnp.maximum(y, 0.0)
        o_ref[...] = y.astype(o_ref.dtype)


def fused_matmul_bn(x, w, scale, bias, residual, relu):
    """x: (M, K), w: (K, N), scale/bias: (N,), residual: (M, N) or None.

    Returns bf16 (M, N)."""
    M, K = x.shape
    _, Nc = w.shape

    # M tiled (never a whole-array block); bf16 sublane alignment = 16.
    TM = min(512, _round_up(M, 16))
    Mp = _round_up(M, TM)
    TK, Kp = _pick_tile(K, 128, 1024)
    TN, Np = _pick_tile(Nc, 128, 512)

    xp = x.astype(jnp.bfloat16)
    if (Mp, Kp) != (M, K):
        xp = jnp.pad(xp, ((0, Mp - M), (0, Kp - K)))
    wp = w.astype(jnp.bfloat16)
    if (Kp, Np) != (K, Nc):
        wp = jnp.pad(wp, ((0, Kp - K), (0, Np - Nc)))
    sp = scale.astype(jnp.float32)
    bp = bias.astype(jnp.float32)
    if Np != Nc:
        sp = jnp.pad(sp, (0, Np - Nc))
        bp = jnp.pad(bp, (0, Np - Nc))
    sp = sp.reshape(1, Np)
    bp = bp.reshape(1, Np)

    has_res = residual is not None
    in_specs = [
        pl.BlockSpec((TM, TK), lambda m, n, k: (m, k)),
        pl.BlockSpec((TK, TN), lambda m, n, k: (k, n)),
        pl.BlockSpec((1, TN), lambda m, n, k: (0, n)),
        pl.BlockSpec((1, TN), lambda m, n, k: (0, n)),
    ]
    args = [xp, wp, sp, bp]
    if has_res:
        rp = residual.astype(jnp.bfloat16)
        if (Mp, Np) != (M, Nc):
            rp = jnp.pad(rp, ((0, Mp - M), (0, Np - Nc)))
        # Block index constant across k -> stays resident, only read once.
        in_specs.append(pl.BlockSpec((TM, TN), lambda m, n, k: (m, n)))
        args.append(rp)

    out = pl.pallas_call(
        functools.partial(_mm_bn_kernel, relu=relu, has_res=has_res),
        out_shape=jax.ShapeDtypeStruct((Mp, Np), jnp.bfloat16),
        grid=(Mp // TM, Np // TN, Kp // TK),
        in_specs=in_specs,
        out_specs=pl.BlockSpec((TM, TN), lambda m, n, k: (m, n)),
        scratch_shapes=[pltpu.VMEM((TM, TN), jnp.float32)],
        compiler_params=pltpu.CompilerParams(
            dimension_semantics=("parallel", "parallel", "arbitrary"),
            vmem_limit_bytes=32 * 1024 * 1024),
    )(*args)
    if (Mp, Np) != (M, Nc):
        out = out[:M, :Nc]
    return out


def _maxpool_kernel(x_ref, o_ref):
    o_ref[...] = jnp.max(x_ref[...], axis=0)


def maxpool_reduce(stacked):
    """stacked: (9, M, C) -> elementwise max over the 9 window taps (tiled)."""
    _, M, C = stacked.shape
    TMp = min(512, _round_up(M, 16))
    Mp = _round_up(M, TMp)
    Cp = _round_up(C, 128)
    neg = float(jnp.finfo(stacked.dtype).min)
    if (Mp, Cp) != (M, C):
        stacked = jnp.pad(stacked, ((0, 0), (0, Mp - M), (0, Cp - C)),
                          constant_values=neg)
    out = pl.pallas_call(
        _maxpool_kernel,
        out_shape=jax.ShapeDtypeStruct((Mp, Cp), stacked.dtype),
        grid=(Mp // TMp,),
        in_specs=[pl.BlockSpec((9, TMp, Cp), lambda m: (0, m, 0))],
        out_specs=pl.BlockSpec((TMp, Cp), lambda m: (m, 0)),
        compiler_params=pltpu.CompilerParams(
            dimension_semantics=("parallel",),
            vmem_limit_bytes=32 * 1024 * 1024),
    )(stacked)
    if (Mp, Cp) != (M, C):
        out = out[:M, :C]
    return out


# --------------------------------------------------------------------------
# Plain-JAX glue: im2col, conv+bn wrapper, maxpool, bottleneck, network
# --------------------------------------------------------------------------
def _extract_patches(x, k, stride, pad, dilation):
    """x: NHWC -> (N, Ho, Wo, k*k*C) with (kh, kw, C) tap ordering."""
    N, H, W, C = x.shape
    if k == 1 and pad == 0:
        xs = x[:, ::stride, ::stride, :]
        return xs, xs.shape[1], xs.shape[2]
    Hp, Wp = H + 2 * pad, W + 2 * pad
    Ho = (Hp - dilation * (k - 1) - 1) // stride + 1
    Wo = (Wp - dilation * (k - 1) - 1) // stride + 1
    xp = jnp.pad(x, ((0, 0), (pad, pad), (pad, pad), (0, 0)))
    cols = []
    for i in range(k):
        for j in range(k):
            cols.append(
                xp[:,
                   i * dilation: i * dilation + stride * (Ho - 1) + 1: stride,
                   j * dilation: j * dilation + stride * (Wo - 1) + 1: stride,
                   :])
    return jnp.concatenate(cols, axis=-1), Ho, Wo


@functools.partial(jax.jit,
                   static_argnames=("k", "stride", "pad", "dilation", "relu"))
def conv_bn(x, params, residual=None, *, k, stride, pad, dilation, relu):
    """Conv2d (no bias) + folded BatchNorm (+residual) (+ReLU).  x: NHWC bf16."""
    w, scale, bias = params                    # w: (k, k, Cin, Cout)
    cout = w.shape[-1]
    patches, Ho, Wo = _extract_patches(x, k, stride, pad, dilation)
    N = x.shape[0]
    x2d = patches.reshape(N * Ho * Wo, -1)
    w2d = w.reshape(-1, cout)
    r2d = None
    if residual is not None:
        r2d = residual.reshape(N * Ho * Wo, cout)
    y2d = fused_matmul_bn(x2d, w2d, scale, bias, r2d, relu=relu)
    return y2d.reshape(N, Ho, Wo, cout)


@jax.jit
def maxpool_3x3_s2(x):
    """MaxPool2d(kernel=3, stride=2, padding=1).  x: NHWC."""
    N, H, W, C = x.shape
    neg = float(jnp.finfo(x.dtype).min)
    xp = jnp.pad(x, ((0, 0), (1, 1), (1, 1), (0, 0)), constant_values=neg)
    Ho = (H + 2 - 3) // 2 + 1
    Wo = (W + 2 - 3) // 2 + 1
    taps = [xp[:, i: i + 2 * (Ho - 1) + 1: 2,
               j: j + 2 * (Wo - 1) + 1: 2, :]
            for i in range(3) for j in range(3)]
    stacked = jnp.stack(taps, axis=0).reshape(9, N * Ho * Wo, C)
    out = maxpool_reduce(stacked)
    return out.reshape(N, Ho, Wo, C)


def bottleneck(x, bp):
    s, d = bp["stride"], bp["dilation"]
    out = conv_bn(x, bp["conv1"], k=1, stride=1, pad=0, dilation=1, relu=True)
    out = conv_bn(out, bp["conv2"], k=3, stride=s, pad=d, dilation=d, relu=True)
    if "down" in bp:
        identity = conv_bn(x, bp["down"], k=1, stride=s, pad=0, dilation=1,
                           relu=False)
    else:
        identity = x
    out = conv_bn(out, bp["conv3"], identity, k=1, stride=1, pad=0, dilation=1,
                  relu=True)
    return out


# --------------------------------------------------------------------------
# Deterministic parameter initialization (shapes match torchvision resnet50)
# --------------------------------------------------------------------------
def _init_conv_bn(key, k, cin, cout):
    kw, kg, kb, km, kv = jax.random.split(key, 5)
    fan_in = k * k * cin
    w = jax.random.normal(kw, (k, k, cin, cout), jnp.float32) * jnp.sqrt(
        2.0 / fan_in)
    gamma = 1.0 + 0.1 * jax.random.normal(kg, (cout,), jnp.float32)
    beta = 0.1 * jax.random.normal(kb, (cout,), jnp.float32)
    rmean = 0.1 * jax.random.normal(km, (cout,), jnp.float32)
    rvar = 1.0 + 0.1 * jax.random.uniform(kv, (cout,), jnp.float32)
    eps = 1e-5
    scale = gamma / jnp.sqrt(rvar + eps)
    bias = beta - rmean * scale
    return (w.astype(jnp.bfloat16), scale, bias)


def init_resnet50_dilated(key):
    keys = iter(jax.random.split(key, 256))
    params = {"conv1": _init_conv_bn(next(keys), 7, 3, 64)}
    inplanes = 64
    # replace_stride_with_dilation = [False, True, True]
    # (planes, blocks, stride_first, dilation_first, dilation_rest)
    layer_cfg = [(64, 3, 1, 1, 1), (128, 4, 2, 1, 1),
                 (256, 6, 1, 1, 2), (512, 3, 1, 2, 4)]
    layers = []
    for planes, blocks, stride, dil_first, dil_rest in layer_cfg:
        block_list = []
        for b in range(blocks):
            s = stride if b == 0 else 1
            d = dil_first if b == 0 else dil_rest
            bp = {
                "stride": s,
                "dilation": d,
                "conv1": _init_conv_bn(next(keys), 1, inplanes, planes),
                "conv2": _init_conv_bn(next(keys), 3, planes, planes),
                "conv3": _init_conv_bn(next(keys), 1, planes, planes * 4),
            }
            if b == 0 and (s != 1 or inplanes != planes * 4):
                bp["down"] = _init_conv_bn(next(keys), 1, inplanes, planes * 4)
            block_list.append(bp)
            inplanes = planes * 4
        layers.append(block_list)
    params["layers"] = layers
    return params


# --------------------------------------------------------------------------
# Forward pass (matches DeepLabV3Backbone.forward)
# --------------------------------------------------------------------------
def deeplabv3_backbone_forward(x_nchw, params):
    x = jnp.transpose(x_nchw, (0, 2, 3, 1)).astype(jnp.bfloat16)  # NCHW -> NHWC
    x = conv_bn(x, params["conv1"], k=7, stride=2, pad=3, dilation=1, relu=True)
    x = maxpool_3x3_s2(x)
    for layer in params["layers"]:
        for bp in layer:
            x = bottleneck(x, bp)
    return jnp.transpose(x, (0, 3, 1, 2)).astype(jnp.float32)     # NHWC -> NCHW


if __name__ == "__main__":
    key = jax.random.PRNGKey(0)
    pkey, xkey = jax.random.split(key)
    params = init_resnet50_dilated(pkey)
    x = jax.random.normal(xkey, (2, 3, 32, 32), jnp.float32)

    out = deeplabv3_backbone_forward(x, params)
    out = jax.block_until_ready(out)

    # output stride 8 (conv1 /2, maxpool /2, layer2 /2), 2048 channels
    assert out.shape == (2, 2048, 4, 4), out.shape
    assert bool(jnp.all(jnp.isfinite(out)))
    print("KERNEL_OK")
</pallas_src>

<mosaic_0001>
module attributes {stable_mosaic.version = 11 : i64} {
  func.func @_mm_bn_kernel(%arg0: i32, %arg1: i32, %arg2: i32, %arg3: memref<512x256xbf16, #tpu.memory_space<vmem>>, %arg4: memref<256x128xbf16, #tpu.memory_space<vmem>>, %arg5: memref<1x128xf32, #tpu.memory_space<vmem>>, %arg6: memref<1x128xf32, #tpu.memory_space<vmem>>, %arg7: memref<512x128xbf16, #tpu.memory_space<vmem>>, %arg8: memref<512x128xf32, #tpu.memory_space<vmem>>) attributes {dimension_semantics = [#tpu.dimension_semantics<parallel>, #tpu.dimension_semantics<parallel>, #tpu.dimension_semantics<arbitrary>], iteration_bounds = array<i64: 1, 1, 1>, scalar_prefetch = 0 : i64, scratch_operands = 1 : i64, tpu.core_type = #tpu.core_type<tc>, window_params = [{transform_indices = @transform_0, window_bounds = array<i64: 512, 256>}, {transform_indices = @transform_1, window_bounds = array<i64: 256, 128>}, {transform_indices = @transform_2, window_bounds = array<i64: 1, 128>}, {transform_indices = @transform_3, window_bounds = array<i64: 1, 128>}, {transform_indices = @transform_4, window_bounds = array<i64: 512, 128>}]} {
    %c0_i32 = arith.constant 0 : i32
    %0 = arith.cmpi eq, %arg2, %c0_i32 : i32
    %1 = arith.extui %0 : i1 to i32
    %c0_i32_0 = arith.constant 0 : i32
    %2 = arith.cmpi ne, %1, %c0_i32_0 : i32
    scf.if %2 {
      %cst_10 = arith.constant 0.000000e+00 : f32
      %12 = vector.broadcast %cst_10 : f32 to vector<512x128xf32>
      %c0_11 = arith.constant 0 : index
      %c0_12 = arith.constant 0 : index
      %13 = vector.load %arg8[%c0_11, %c0_12] : memref<512x128xf32, #tpu.memory_space<vmem>>, vector<512x128xf32>
      tpu.vector_store %arg8[%c0_11, %c0_12], %12 {strides = array<i32>} : memref<512x128xf32, #tpu.memory_space<vmem>>, vector<512x128xf32>,
    } else {
    }
    %c0 = arith.constant 0 : index
    %c0_1 = arith.constant 0 : index
    %3 = vector.load %arg8[%c0, %c0_1] : memref<512x128xf32, #tpu.memory_space<vmem>>, vector<512x128xf32>
    %c0_2 = arith.constant 0 : index
    %c0_3 = arith.constant 0 : index
    %4 = vector.load %arg3[%c0_2, %c0_3] : memref<512x256xbf16, #tpu.memory_space<vmem>>, vector<512x256xbf16>
    %c0_4 = arith.constant 0 : index
    %c0_5 = arith.constant 0 : index
    %5 = vector.load %arg4[%c0_4, %c0_5] : memref<256x128xbf16, #tpu.memory_space<vmem>>, vector<256x128xbf16>
    %cst = arith.constant dense<0.000000e+00> : vector<512x128xf32>
    %6 = tpu.matmul %4, %5, %cst {dimension_numbers = #tpu.dot_dimension_numbers<[1], [0], [0], [1], [0, 0, 1, 1], [], []>} : vector<512x256xbf16>, vector<256x128xbf16>, vector<512x128xf32> -> vector<512x128xf32>
    %7 = arith.addf %3, %6 : vector<512x128xf32>
    %c0_6 = arith.constant 0 : index
    %c0_7 = arith.constant 0 : index
    %8 = vector.load %arg8[%c0_6, %c0_7] : memref<512x128xf32, #tpu.memory_space<vmem>>, vector<512x128xf32>
    tpu.vector_store %arg8[%c0_6, %c0_7], %7 {strides = array<i32>} : memref<512x128xf32, #tpu.memory_space<vmem>>, vector<512x128xf32>,
    %c0_i32_8 = arith.constant 0 : i32
    %9 = arith.cmpi eq, %arg2, %c0_i32_8 : i32
    %10 = arith.extui %9 : i1 to i32
    %c0_i32_9 = arith.constant 0 : i32
    %11 = arith.cmpi ne, %10, %c0_i32_9 : i32
    scf.if %11 {
      %c0_10 = arith.constant 0 : index
      %c0_11 = arith.constant 0 : index
      %12 = vector.load %arg8[%c0_10, %c0_11] : memref<512x128xf32, #tpu.memory_space<vmem>>, vector<512x128xf32>
      %c0_12 = arith.constant 0 : index
      %c0_13 = arith.constant 0 : index
      %13 = vector.load %arg5[%c0_12, %c0_13] : memref<1x128xf32, #tpu.memory_space<vmem>>, vector<1x128xf32>
      %14 = vector.broadcast %13 : vector<1x128xf32> to vector<512x128xf32>
      %15 = arith.mulf %12, %14 : vector<512x128xf32>
      %c0_14 = arith.constant 0 : index
      %c0_15 = arith.constant 0 : index
      %16 = vector.load %arg6[%c0_14, %c0_15] : memref<1x128xf32, #tpu.memory_space<vmem>>, vector<1x128xf32>
      %17 = vector.broadcast %16 : vector<1x128xf32> to vector<512x128xf32>
      %18 = arith.addf %15, %17 : vector<512x128xf32>
      %cst_16 = arith.constant 0.000000e+00 : f32
      %19 = vector.broadcast %cst_16 : f32 to vector<512x128xf32>
      %20 = arith.maximumf %18, %19 : vector<512x128xf32>
      %21 = arith.truncf %20 : vector<512x128xf32> to vector<512x128xbf16>
      %c0_17 = arith.constant 0 : index
      %c0_18 = arith.constant 0 : index
      %22 = vector.load %arg7[%c0_17, %c0_18] : memref<512x128xbf16, #tpu.memory_space<vmem>>, vector<512x128xbf16>
      tpu.vector_store %arg7[%c0_17, %c0_18], %21 {strides = array<i32>} : memref<512x128xbf16, #tpu.memory_space<vmem>>, vector<512x128xbf16>,
    } else {
    }
    return
  }
  func.func @transform_0(%arg0: i32, %arg1: i32, %arg2: i32) -> (i32, i32) {
    %c0_i32 = arith.constant 0 : i32
    return %arg0, %arg2 : i32, i32
  }
  func.func @transform_1(%arg0: i32, %arg1: i32, %arg2: i32) -> (i32, i32) {
    %c0_i32 = arith.constant 0 : i32
    return %arg2, %arg1 : i32, i32
  }
  func.func @transform_2(%arg0: i32, %arg1: i32, %arg2: i32) -> (i32, i32) {
    %c0_i32 = arith.constant 0 : i32
    %c0_i32_0 = arith.constant 0 : i32
    return %c0_i32, %arg1 : i32, i32
  }
  func.func @transform_3(%arg0: i32, %arg1: i32, %arg2: i32) -> (i32, i32) {
    %c0_i32 = arith.constant 0 : i32
    %c0_i32_0 = arith.constant 0 : i32
    return %c0_i32, %arg1 : i32, i32
  }
  func.func @transform_4(%arg0: i32, %arg1: i32, %arg2: i32) -> (i32, i32) {
    %c0_i32 = arith.constant 0 : i32
    return %arg0, %arg1 : i32, i32
  }
}

</mosaic_0001>

<llo_original>
// kernel: conv_bn.1
$region0: #{conv_bn.1}
  #allocation0 [shape = 'u32[]', space=smem, size = 0x4, offset = 0x4, fixed_abs, tag = 'smem constant byte address 0x4 - core index']
  #allocation1 [shape = 'u32[72,128]{1,0:T(1,128)}', space=vmem, size = 0x9000, scoped, tag = 'internal scratch']
  #allocation2 [shape = 'f32[512,128]{1,0:T(8,128)}', space=vmem, size = 0x40000, scoped, tag = 'scratch operand']
  %s0 = inlined_call_operand.vmem [shape: bf16[512,256], index: 0, kind: input, shape index: {}]
  %s1 = inlined_call_operand.vmem [shape: bf16[256,128], index: 1, kind: input, shape index: {}]
  %s2 = inlined_call_operand.vmem [shape: f32[1,128], index: 2, kind: input, shape index: {}]
  %s3 = inlined_call_operand.vmem [shape: f32[1,128], index: 3, kind: input, shape index: {}]
  %s4 = inlined_call_operand.hbm [shape: bf16[512,128], index: 4, kind: output, shape index: {}]
  %s5 = sld [smem:[#allocation0]]
  $region34: #{conv_bn.1} parent=0
    _
  %s7 = ssub.s32 1, %s5
  %s8 = scalar_select 0, %s7, %s5
  $region1: #{conv_bn.1} parent=0
    #allocation3 [shape = 'u8[131072]{0}', space=vmem, size = 0x20000, scoped, tag = 'output window, operand 0, single buffered']
    #allocation4 [shape = 's32[1]{0}', space=sflag, size = 0x4, scoped, tag = 'scoped memory for conv_bn.1']
    %9 = vsyncpa [#allocation4], 0
    // Predicated region
    $region2: #{conv_bn.1} parent=1 // pred_check
      _
    $region3: #{conv_bn.1} parent=1 // pred_check_branch
      %11 = sbr.rel (0) target = $region5
    $region4: #{conv_bn.1} parent=1 // pred_region
      _
    $region5: #{conv_bn.1} parent=1 // pred_fallthru
      _
    // Predicated region
    $region6: #{conv_bn.1} parent=1 // pred_check
      _
    $region7: #{conv_bn.1} parent=1 // pred_check_branch
      %13 = sbr.rel (0) target = $region9
    $region8: #{conv_bn.1} parent=1 // pred_region
      _
    $region9: #{conv_bn.1} parent=1 // pred_fallthru
      _
    // Predicated region
    $region10: #{conv_bn.1} parent=1 // pred_check
      _
    $region11: #{conv_bn.1} parent=1 // pred_check_branch
      %15 = sbr.rel (0) target = $region13
    $region12: #{conv_bn.1} parent=1 // pred_region
      _
    $region13: #{conv_bn.1} parent=1 // pred_fallthru
      _
    // Predicated region
    $region14: #{conv_bn.1} parent=1 // pred_check
      _
    $region15: #{conv_bn.1} parent=1 // pred_check_branch
      %17 = sbr.rel (0) target = $region17
    $region16: #{conv_bn.1} parent=1 // pred_region
      _
    $region17: #{conv_bn.1} parent=1 // pred_fallthru
      _
    %p18 = scmp.eq.s32.totalorder 0, 0
    // Predicated region
    $region18: #{conv_bn.1} parent=1 // pred_check
      %p19 = pneg %p18
    $region19: #{conv_bn.1} parent=1 // pred_check_branch
      %21 = sbr.rel (%p19) target = $region21
    $region20: #{conv_bn.1} parent=1 // pred_region
      %22 = vst [vmem:[#allocation2] sm:$0xff] 0.0
      %23 = vst [vmem:[#allocation2 + $0x8] sm:$0xff] 0.0
      %24 = vst [vmem:[#allocation2 + $0x10] sm:$0xff] 0.0
      %25 = vst [vmem:[#allocation2 + $0x18] sm:$0xff] 0.0
      %26 = vst [vmem:[#allocation2 + $0x20] sm:$0xff] 0.0
      %27 = vst [vmem:[#allocation2 + $0x28] sm:$0xff] 0.0
      %28 = vst [vmem:[#allocation2 + $0x30] sm:$0xff] 0.0
      %29 = vst [vmem:[#allocation2 + $0x38] sm:$0xff] 0.0
      %30 = vst [vmem:[#allocation2 + $0x40] sm:$0xff] 0.0
      %31 = vst [vmem:[#allocation2 + $0x48] sm:$0xff] 0.0
      %32 = vst [vmem:[#allocation2 + $0x50] sm:$0xff] 0.0
      %33 = vst [vmem:[#allocation2 + $0x58] sm:$0xff] 0.0
      %34 = vst [vmem:[#allocation2 + $0x60] sm:$0xff] 0.0
      %35 = vst [vmem:[#allocation2 + $0x68] sm:$0xff] 0.0
      %36 = vst [vmem:[#allocation2 + $0x70] sm:$0xff] 0.0
      %37 = vst [vmem:[#allocation2 + $0x78] sm:$0xff] 0.0
      %38 = vst [vmem:[#allocation2 + $0x80] sm:$0xff] 0.0
      %39 = vst [vmem:[#allocation2 + $0x88] sm:$0xff] 0.0
      %40 = vst [vmem:[#allocation2 + $0x90] sm:$0xff] 0.0
      %41 = vst [vmem:[#allocation2 + $0x98] sm:$0xff] 0.0
      %42 = vst [vmem:[#allocation2 + $0xa0] sm:$0xff] 0.0
      %43 = vst [vmem:[#allocation2 + $0xa8] sm:$0xff] 0.0
      %44 = vst [vmem:[#allocation2 + $0xb0] sm:$0xff] 0.0
      %45 = vst [vmem:[#allocation2 + $0xb8] sm:$0xff] 0.0
      %46 = vst [vmem:[#allocation2 + $0xc0] sm:$0xff] 0.0
      %47 = vst [vmem:[#allocation2 + $0xc8] sm:$0xff] 0.0
      %48 = vst [vmem:[#allocation2 + $0xd0] sm:$0xff] 0.0
      %49 = vst [vmem:[#allocation2 + $0xd8] sm:$0xff] 0.0
      %50 = vst [vmem:[#allocation2 + $0xe0] sm:$0xff] 0.0
      %51 = vst [vmem:[#allocation2 + $0xe8] sm:$0xff] 0.0
      %52 = vst [vmem:[#allocation2 + $0xf0] sm:$0xff] 0.0
      %53 = vst [vmem:[#allocation2 + $0xf8] sm:$0xff] 0.0
      %54 = vst [vmem:[#allocation2 + $0x100] sm:$0xff] 0.0
      %55 = vst [vmem:[#allocation2 + $0x108] sm:$0xff] 0.0
      %56 = vst [vmem:[#allocation2 + $0x110] sm:$0xff] 0.0
      %57 = vst [vmem:[#allocation2 + $0x118] sm:$0xff] 0.0
      %58 = vst [vmem:[#allocation2 + $0x120] sm:$0xff] 0.0
      %59 = vst [vmem:[#allocation2 + $0x128] sm:$0xff] 0.0
      %60 = vst [vmem:[#allocation2 + $0x130] sm:$0xff] 0.0
      %61 = vst [vmem:[#allocation2 + $0x138] sm:$0xff] 0.0
      %62 = vst [vmem:[#allocation2 + $0x140] sm:$0xff] 0.0
      %63 = vst [vmem:[#allocation2 + $0x148] sm:$0xff] 0.0
      %64 = vst [vmem:[#allocation2 + $0x150] sm:$0xff] 0.0
      %65 = vst [vmem:[#allocation2 + $0x158] sm:$0xff] 0.0
      %66 = vst [vmem:[#allocation2 + $0x160] sm:$0xff] 0.0
      %67 = vst [vmem:[#allocation2 + $0x168] sm:$0xff] 0.0
      %68 = vst [vmem:[#allocation2 + $0x170] sm:$0xff] 0.0
      %69 = vst [vmem:[#allocation2 + $0x178] sm:$0xff] 0.0
      %70 = vst [vmem:[#allocation2 + $0x180] sm:$0xff] 0.0
      %71 = vst [vmem:[#allocation2 + $0x188] sm:$0xff] 0.0
      %72 = vst [vmem:[#allocation2 + $0x190] sm:$0xff] 0.0
      %73 = vst [vmem:[#allocation2 + $0x198] sm:$0xff] 0.0
      %74 = vst [vmem:[#allocation2 + $0x1a0] sm:$0xff] 0.0
      %75 = vst [vmem:[#allocation2 + $0x1a8] sm:$0xff] 0.0
      %76 = vst [vmem:[#allocation2 + $0x1b0] sm:$0xff] 0.0
      %77 = vst [vmem:[#allocation2 + $0x1b8] sm:$0xff] 0.0
      %78 = vst [vmem:[#allocation2 + $0x1c0] sm:$0xff] 0.0
      %79 = vst [vmem:[#allocation2 + $0x1c8] sm:$0xff] 0.0
      %80 = vst [vmem:[#allocation2 + $0x1d0] sm:$0xff] 0.0
      %81 = vst [vmem:[#allocation2 + $0x1d8] sm:$0xff] 0.0
      %82 = vst [vmem:[#allocation2 + $0x1e0] sm:$0xff] 0.0
      %83 = vst [vmem:[#allocation2 + $0x1e8] sm:$0xff] 0.0
      %84 = vst [vmem:[#allocation2 + $0x1f0] sm:$0xff] 0.0
      %85 = vst [vmem:[#allocation2 + $0x1f8] sm:$0xff] 0.0
    $region21: #{conv_bn.1} parent=1 // pred_fallthru
      _
    %v86 = vld [vmem:[#allocation2] sm:$0xff]
    %v87 = vld [vmem:[#allocation2 + $0x8] sm:$0xff]
    %v88 = vld [vmem:[#allocation2 + $0x10] sm:$0xff]
    %v89 = vld [vmem:[#allocation2 + $0x18] sm:$0xff]
    %v90 = vld [vmem:[#allocation2 + $0x20] sm:$0xff]
    %v91 = vld [vmem:[#allocation2 + $0x28] sm:$0xff]
    %v92 = vld [vmem:[#allocation2 + $0x30] sm:$0xff]
    %v93 = vld [vmem:[#allocation2 + $0x38] sm:$0xff]
    %v94 = vld [vmem:[#allocation2 + $0x40] sm:$0xff]
    %v95 = vld [vmem:[#allocation2 + $0x48] sm:$0xff]
    %v96 = vld [vmem:[#allocation2 + $0x50] sm:$0xff]
    %v97 = vld [vmem:[#allocation2 + $0x58] sm:$0xff]
    %v98 = vld [vmem:[#allocation2 + $0x60] sm:$0xff]
    %v99 = vld [vmem:[#allocation2 + $0x68] sm:$0xff]
    %v100 = vld [vmem:[#allocation2 + $0x70] sm:$0xff]
    %v101 = vld [vmem:[#allocation2 + $0x78] sm:$0xff]
    %v102 = vld [vmem:[#allocation2 + $0x80] sm:$0xff]
    %v103 = vld [vmem:[#allocation2 + $0x88] sm:$0xff]
    %v104 = vld [vmem:[#allocation2 + $0x90] sm:$0xff]
    %v105 = vld [vmem:[#allocation2 + $0x98] sm:$0xff]
    %v106 = vld [vmem:[#allocation2 + $0xa0] sm:$0xff]
    %v107 = vld [vmem:[#allocation2 + $0xa8] sm:$0xff]
    %v108 = vld [vmem:[#allocation2 + $0xb0] sm:$0xff]
    %v109 = vld [vmem:[#allocation2 + $0xb8] sm:$0xff]
    %v110 = vld [vmem:[#allocation2 + $0xc0] sm:$0xff]
    %v111 = vld [vmem:[#allocation2 + $0xc8] sm:$0xff]
    %v112 = vld [vmem:[#allocation2 + $0xd0] sm:$0xff]
    %v113 = vld [vmem:[#allocation2 + $0xd8] sm:$0xff]
    %v114 = vld [vmem:[#allocation2 + $0xe0] sm:$0xff]
    %v115 = vld [vmem:[#allocation2 + $0xe8] sm:$0xff]
    %v116 = vld [vmem:[#allocation2 + $0xf0] sm:$0xff]
    %v117 = vld [vmem:[#allocation2 + $0xf8] sm:$0xff]
    %v118 = vld [vmem:[#allocation2 + $0x100] sm:$0xff]
    %v119 = vld [vmem:[#allocation2 + $0x108] sm:$0xff]
    %v120 = vld [vmem:[#allocation2 + $0x110] sm:$0xff]
    %v121 = vld [vmem:[#allocation2 + $0x118] sm:$0xff]
    %v122 = vld [vmem:[#allocation2 + $0x120] sm:$0xff]
    %v123 = vld [vmem:[#allocation2 + $0x128] sm:$0xff]
    %v124 = vld [vmem:[#allocation2 + $0x130] sm:$0xff]
    %v125 = vld [vmem:[#allocation2 + $0x138] sm:$0xff]
    %v126 = vld [vmem:[#allocation2 + $0x140] sm:$0xff]
    %v127 = vld [vmem:[#allocation2 + $0x148] sm:$0xff]
    %v128 = vld [vmem:[#allocation2 + $0x150] sm:$0xff]
    %v129 = vld [vmem:[#allocation2 + $0x158] sm:$0xff]
    %v130 = vld [vmem:[#allocation2 + $0x160] sm:$0xff]
    %v131 = vld [vmem:[#allocation2 + $0x168] sm:$0xff]
    %v132 = vld [vmem:[#allocation2 + $0x170] sm:$0xff]
    %v133 = vld [vmem:[#allocation2 + $0x178] sm:$0xff]
    %v134 = vld [vmem:[#allocation2 + $0x180] sm:$0xff]
    %v135 = vld [vmem:[#allocation2 + $0x188] sm:$0xff]
    %v136 = vld [vmem:[#allocation2 + $0x190] sm:$0xff]
    %v137 = vld [vmem:[#allocation2 + $0x198] sm:$0xff]
    %v138 = vld [vmem:[#allocation2 + $0x1a0] sm:$0xff]
    %v139 = vld [vmem:[#allocation2 + $0x1a8] sm:$0xff]
    %v140 = vld [vmem:[#allocation2 + $0x1b0] sm:$0xff]
    %v141 = vld [vmem:[#allocation2 + $0x1b8] sm:$0xff]
    %v142 = vld [vmem:[#allocation2 + $0x1c0] sm:$0xff]
    %v143 = vld [vmem:[#allocation2 + $0x1c8] sm:$0xff]
    %v144 = vld [vmem:[#allocation2 + $0x1d0] sm:$0xff]
    %v145 = vld [vmem:[#allocation2 + $0x1d8] sm:$0xff]
    %v146 = vld [vmem:[#allocation2 + $0x1e0] sm:$0xff]
    %v147 = vld [vmem:[#allocation2 + $0x1e8] sm:$0xff]
    %v148 = vld [vmem:[#allocation2 + $0x1f0] sm:$0xff]
    %v149 = vld [vmem:[#allocation2 + $0x1f8] sm:$0xff]
    %v150 = vld [vmem:[%s0] sm:$0xff]
    %v151 = vld [vmem:[%s0 + $0x8] sm:$0xff]
    %v152 = vld [vmem:[%s0 + $0x10] sm:$0xff]
    %v153 = vld [vmem:[%s0 + $0x18] sm:$0xff]
    %v154 = vld [vmem:[%s0 + $0x20] sm:$0xff]
    %v155 = vld [vmem:[%s0 + $0x28] sm:$0xff]
    %v156 = vld [vmem:[%s0 + $0x30] sm:$0xff]
    %v157 = vld [vmem:[%s0 + $0x38] sm:$0xff]
    %v158 = vld [vmem:[%s0 + $0x40] sm:$0xff]
    %v159 = vld [vmem:[%s0 + $0x48] sm:$0xff]
    %v160 = vld [vmem:[%s0 + $0x50] sm:$0xff]
    %v161 = vld [vmem:[%s0 + $0x58] sm:$0xff]
    %v162 = vld [vmem:[%s0 + $0x60] sm:$0xff]
    %v163 = vld [vmem:[%s0 + $0x68] sm:$0xff]
    %v164 = vld [vmem:[%s0 + $0x70] sm:$0xff]
    %v165 = vld [vmem:[%s0 + $0x78] sm:$0xff]
    %v166 = vld [vmem:[%s0 + $0x80] sm:$0xff]
    %v167 = vld [vmem:[%s0 + $0x88] sm:$0xff]
    %v168 = vld [vmem:[%s0 + $0x90] sm:$0xff]
    %v169 = vld [vmem:[%s0 + $0x98] sm:$0xff]
    %v170 = vld [vmem:[%s0 + $0xa0] sm:$0xff]
    %v171 = vld [vmem:[%s0 + $0xa8] sm:$0xff]
    %v172 = vld [vmem:[%s0 + $0xb0] sm:$0xff]
    %v173 = vld [vmem:[%s0 + $0xb8] sm:$0xff]
    %v174 = vld [vmem:[%s0 + $0xc0] sm:$0xff]
    %v175 = vld [vmem:[%s0 + $0xc8] sm:$0xff]
    %v176 = vld [vmem:[%s0 + $0xd0] sm:$0xff]
    %v177 = vld [vmem:[%s0 + $0xd8] sm:$0xff]
    %v178 = vld [vmem:[%s0 + $0xe0] sm:$0xff]
    %v179 = vld [vmem:[%s0 + $0xe8] sm:$0xff]
    %v180 = vld [vmem:[%s0 + $0xf0] sm:$0xff]
    %v181 = vld [vmem:[%s0 + $0xf8] sm:$0xff]
    %v182 = vld [vmem:[%s0 + $0x100] sm:$0xff]
    %v183 = vld [vmem:[%s0 + $0x108] sm:$0xff]
    %v184 = vld [vmem:[%s0 + $0x110] sm:$0xff]
    %v185 = vld [vmem:[%s0 + $0x118] sm:$0xff]
    %v186 = vld [vmem:[%s0 + $0x120] sm:$0xff]
    %v187 = vld [vmem:[%s0 + $0x128] sm:$0xff]
    %v188 = vld [vmem:[%s0 + $0x130] sm:$0xff]
    %v189 = vld [vmem:[%s0 + $0x138] sm:$0xff]
    %v190 = vld [vmem:[%s0 + $0x140] sm:$0xff]
    %v191 = vld [vmem:[%s0 + $0x148] sm:$0xff]
    %v192 = vld [vmem:[%s0 + $0x150] sm:$0xff]
    %v193 = vld [vmem:[%s0 + $0x158] sm:$0xff]
    %v194 = vld [vmem:[%s0 + $0x160] sm:$0xff]
    %v195 = vld [vmem:[%s0 + $0x168] sm:$0xff]
    %v196 = vld [vmem:[%s0 + $0x170] sm:$0xff]
    %v197 = vld [vmem:[%s0 + $0x178] sm:$0xff]
    %v198 = vld [vmem:[%s0 + $0x180] sm:$0xff]
    %v199 = vld [vmem:[%s0 + $0x188] sm:$0xff]
    %v200 = vld [vmem:[%s0 + $0x190] sm:$0xff]
    %v201 = vld [vmem:[%s0 + $0x198] sm:$0xff]
    %v202 = vld [vmem:[%s0 + $0x1a0] sm:$0xff]
    %v203 = vld [vmem:[%s0 + $0x1a8] sm:$0xff]
    %v204 = vld [vmem:[%s0 + $0x1b0] sm:$0xff]
    %v205 = vld [vmem:[%s0 + $0x1b8] sm:$0xff]
    %v206 = vld [vmem:[%s0 + $0x1c0] sm:$0xff]
    %v207 = vld [vmem:[%s0 + $0x1c8] sm:$0xff]
    %v208 = vld [vmem:[%s0 + $0x1d0] sm:$0xff]
    %v209 = vld [vmem:[%s0 + $0x1d8] sm:$0xff]
    %v210 = vld [vmem:[%s0 + $0x1e0] sm:$0xff]
    %v211 = vld [vmem:[%s0 + $0x1e8] sm:$0xff]
    %v212 = vld [vmem:[%s0 + $0x1f0] sm:$0xff]
    %v213 = vld [vmem:[%s0 + $0x1f8] sm:$0xff]
    %v214 = vld [vmem:[%s1] sm:$0xf]
    %v215 = vld [vmem:[%s1 + $0x4] sm:$0xf]
    %v216 = vld [vmem:[%s1 + $0x8] sm:$0xf]
    %v217 = vld [vmem:[%s1 + $0xc] sm:$0xf]
    %v218 = vld [vmem:[%s1 + $0x10] sm:$0xf]
    %v219 = vld [vmem:[%s1 + $0x14] sm:$0xf]
    %v220 = vld [vmem:[%s1 + $0x18] sm:$0xf]
    %v221 = vld [vmem:[%s1 + $0x1c] sm:$0xf]
    %v222 = vld [vmem:[%s1 + $0x20] sm:$0xf]
    %v223 = vld [vmem:[%s1 + $0x24] sm:$0xf]
    %v224 = vld [vmem:[%s1 + $0x28] sm:$0xf]
    %v225 = vld [vmem:[%s1 + $0x2c] sm:$0xf]
    %v226 = vld [vmem:[%s1 + $0x30] sm:$0xf]
    %v227 = vld [vmem:[%s1 + $0x34] sm:$0xf]
    %v228 = vld [vmem:[%s1 + $0x38] sm:$0xf]
    %v229 = vld [vmem:[%s1 + $0x3c] sm:$0xf]
    %v230 = vld [vmem:[%s1 + $0x40] sm:$0xf]
    %v231 = vld [vmem:[%s1 + $0x44] sm:$0xf]
    %v232 = vld [vmem:[%s1 + $0x48] sm:$0xf]
    %v233 = vld [vmem:[%s1 + $0x4c] sm:$0xf]
    %v234 = vld [vmem:[%s1 + $0x50] sm:$0xf]
    %v235 = vld [vmem:[%s1 + $0x54] sm:$0xf]
    %v236 = vld [vmem:[%s1 + $0x58] sm:$0xf]
    %v237 = vld [vmem:[%s1 + $0x5c] sm:$0xf]
    %v238 = vld [vmem:[%s1 + $0x60] sm:$0xf]
    %v239 = vld [vmem:[%s1 + $0x64] sm:$0xf]
    %v240 = vld [vmem:[%s1 + $0x68] sm:$0xf]
    %v241 = vld [vmem:[%s1 + $0x6c] sm:$0xf]
    %v242 = vld [vmem:[%s1 + $0x70] sm:$0xf]
    %v243 = vld [vmem:[%s1 + $0x74] sm:$0xf]
    %v244 = vld [vmem:[%s1 + $0x78] sm:$0xf]
    %v245 = vld [vmem:[%s1 + $0x7c] sm:$0xf]
    %v310 = vunpack.c.l.b16 %v150
    %v311 = vunpack.c.h.b16 %v150
    %v312 = vunpack.c.l.b16 %v151
    %v313 = vunpack.c.h.b16 %v151
    %v314 = vunpack.c.l.b16 %v152
    %v315 = vunpack.c.h.b16 %v152
    %v316 = vunpack.c.l.b16 %v153
    %v317 = vunpack.c.h.b16 %v153
    %v318 = vunpack.c.l.b16 %v154
    %v319 = vunpack.c.h.b16 %v154
    %v320 = vunpack.c.l.b16 %v155
    %v321 = vunpack.c.h.b16 %v155
    %v322 = vunpack.c.l.b16 %v156
    %v323 = vunpack.c.h.b16 %v156
    %v324 = vunpack.c.l.b16 %v157
    %v325 = vunpack.c.h.b16 %v157
    %v326 = vunpack.c.l.b16 %v158
    %v327 = vunpack.c.h.b16 %v158
    %v328 = vunpack.c.l.b16 %v159
    %v329 = vunpack.c.h.b16 %v159
    %v330 = vunpack.c.l.b16 %v160
    %v331 = vunpack.c.h.b16 %v160
    %v332 = vunpack.c.l.b16 %v161
    %v333 = vunpack.c.h.b16 %v161
    %v334 = vunpack.c.l.b16 %v162
    %v335 = vunpack.c.h.b16 %v162
    %v336 = vunpack.c.l.b16 %v163
    %v337 = vunpack.c.h.b16 %v163
    %v338 = vunpack.c.l.b16 %v164
    %v339 = vunpack.c.h.b16 %v164
    %v340 = vunpack.c.l.b16 %v165
    %v341 = vunpack.c.h.b16 %v165
    %v342 = vunpack.c.l.b16 %v166
    %v343 = vunpack.c.h.b16 %v166
    %v344 = vunpack.c.l.b16 %v167
    %v345 = vunpack.c.h.b16 %v167
    %v346 = vunpack.c.l.b16 %v168
    %v347 = vunpack.c.h.b16 %v168
    %v348 = vunpack.c.l.b16 %v169
    %v349 = vunpack.c.h.b16 %v169
    %v350 = vunpack.c.l.b16 %v170
    %v351 = vunpack.c.h.b16 %v170
    %v352 = vunpack.c.l.b16 %v171
    %v353 = vunpack.c.h.b16 %v171
    %v354 = vunpack.c.l.b16 %v172
    %v355 = vunpack.c.h.b16 %v172
    %v356 = vunpack.c.l.b16 %v173
    %v357 = vunpack.c.h.b16 %v173
    %v358 = vunpack.c.l.b16 %v174
    %v359 = vunpack.c.h.b16 %v174
    %v360 = vunpack.c.l.b16 %v175
    %v361 = vunpack.c.h.b16 %v175
    %v362 = vunpack.c.l.b16 %v176
    %v363 = vunpack.c.h.b16 %v176
    %v364 = vunpack.c.l.b16 %v177
    %v365 = vunpack.c.h.b16 %v177
    %v366 = vunpack.c.l.b16 %v178
    %v367 = vunpack.c.h.b16 %v178
    %v368 = vunpack.c.l.b16 %v179
    %v369 = vunpack.c.h.b16 %v179
    %v370 = vunpack.c.l.b16 %v180
    %v371 = vunpack.c.h.b16 %v180
    %v372 = vunpack.c.l.b16 %v181
    %v373 = vunpack.c.h.b16 %v181
    %v374 = vunpack.c.l.b16 %v182
    %v375 = vunpack.c.h.b16 %v182
    %v376 = vunpack.c.l.b16 %v183
    %v377 = vunpack.c.h.b16 %v183
    %v378 = vunpack.c.l.b16 %v184
    %v379 = vunpack.c.h.b16 %v184
    %v380 = vunpack.c.l.b16 %v185
    %v381 = vunpack.c.h.b16 %v185
    %v382 = vunpack.c.l.b16 %v186
    %v383 = vunpack.c.h.b16 %v186
    %v384 = vunpack.c.l.b16 %v187
    %v385 = vunpack.c.h.b16 %v187
    %v386 = vunpack.c.l.b16 %v188
    %v387 = vunpack.c.h.b16 %v188
    %v388 = vunpack.c.l.b16 %v189
    %v389 = vunpack.c.h.b16 %v189
    %v390 = vunpack.c.l.b16 %v190
    %v391 = vunpack.c.h.b16 %v190
    %v392 = vunpack.c.l.b16 %v191
    %v393 = vunpack.c.h.b16 %v191
    %v394 = vunpack.c.l.b16 %v192
    %v395 = vunpack.c.h.b16 %v192
    %v396 = vunpack.c.l.b16 %v193
    %v397 = vunpack.c.h.b16 %v193
    %v398 = vunpack.c.l.b16 %v194
    %v399 = vunpack.c.h.b16 %v194
    %v400 = vunpack.c.l.b16 %v195
    %v401 = vunpack.c.h.b16 %v195
    %v402 = vunpack.c.l.b16 %v196
    %v403 = vunpack.c.h.b16 %v196
    %v404 = vunpack.c.l.b16 %v197
    %v405 = vunpack.c.h.b16 %v197
    %v406 = vunpack.c.l.b16 %v198
    %v407 = vunpack.c.h.b16 %v198
    %v408 = vunpack.c.l.b16 %v199
    %v409 = vunpack.c.h.b16 %v199
    %v410 = vunpack.c.l.b16 %v200
    %v411 = vunpack.c.h.b16 %v200
    %v412 = vunpack.c.l.b16 %v201
    %v413 = vunpack.c.h.b16 %v201
    %v414 = vunpack.c.l.b16 %v202
    %v415 = vunpack.c.h.b16 %v202
    %v416 = vunpack.c.l.b16 %v203
    %v417 = vunpack.c.h.b16 %v203
    %v418 = vunpack.c.l.b16 %v204
    %v419 = vunpack.c.h.b16 %v204
    %v420 = vunpack.c.l.b16 %v205
    %v421 = vunpack.c.h.b16 %v205
    %v422 = vunpack.c.l.b16 %v206
    %v423 = vunpack.c.h.b16 %v206
    %v424 = vunpack.c.l.b16 %v207
    %v425 = vunpack.c.h.b16 %v207
    %v426 = vunpack.c.l.b16 %v208
    %v427 = vunpack.c.h.b16 %v208
    %v428 = vunpack.c.l.b16 %v209
    %v429 = vunpack.c.h.b16 %v209
    %v430 = vunpack.c.l.b16 %v210
    %v431 = vunpack.c.h.b16 %v210
    %v432 = vunpack.c.l.b16 %v211
    %v433 = vunpack.c.h.b16 %v211
    %v434 = vunpack.c.l.b16 %v212
    %v435 = vunpack.c.h.b16 %v212
    %v436 = vunpack.c.l.b16 %v213
    %v437 = vunpack.c.h.b16 %v213
    %v438 = vpack.c.b16 %v312, %v310
    %v439 = vpack.c.b16 %v313, %v311
    %v440 = vpack.c.b16 %v316, %v314
    %v441 = vpack.c.b16 %v317, %v315
    %v442 = vpack.c.b16 %v320, %v318
    %v443 = vpack.c.b16 %v321, %v319
    %v444 = vpack.c.b16 %v324, %v322
    %v445 = vpack.c.b16 %v325, %v323
    %v446 = vpack.c.b16 %v328, %v326
    %v447 = vpack.c.b16 %v329, %v327
    %v448 = vpack.c.b16 %v332, %v330
    %v449 = vpack.c.b16 %v333, %v331
    %v450 = vpack.c.b16 %v336, %v334
    %v451 = vpack.c.b16 %v337, %v335
    %v452 = vpack.c.b16 %v340, %v338
    %v453 = vpack.c.b16 %v341, %v339
    %v454 = vpack.c.b16 %v344, %v342
    %v455 = vpack.c.b16 %v345, %v343
    %v456 = vpack.c.b16 %v348, %v346
    %v457 = vpack.c.b16 %v349, %v347
    %v458 = vpack.c.b16 %v352, %v350
    %v459 = vpack.c.b16 %v353, %v351
    %v460 = vpack.c.b16 %v356, %v354
    %v461 = vpack.c.b16 %v357, %v355
    %v462 = vpack.c.b16 %v360, %v358
    %v463 = vpack.c.b16 %v361, %v359
    %v464 = vpack.c.b16 %v364, %v362
    %v465 = vpack.c.b16 %v365, %v363
    %v466 = vpack.c.b16 %v368, %v366
    %v467 = vpack.c.b16 %v369, %v367
    %v468 = vpack.c.b16 %v372, %v370
    %v469 = vpack.c.b16 %v373, %v371
    %v470 = vpack.c.b16 %v376, %v374
    %v471 = vpack.c.b16 %v377, %v375
    %v472 = vpack.c.b16 %v380, %v378
    %v473 = vpack.c.b16 %v381, %v379
    %v474 = vpack.c.b16 %v384, %v382
    %v475 = vpack.c.b16 %v385, %v383
    %v476 = vpack.c.b16 %v388, %v386
    %v477 = vpack.c.b16 %v389, %v387
    %v478 = vpack.c.b16 %v392, %v390
    %v479 = vpack.c.b16 %v393, %v391
    %v480 = vpack.c.b16 %v396, %v394
    %v481 = vpack.c.b16 %v397, %v395
    %v482 = vpack.c.b16 %v400, %v398
    %v483 = vpack.c.b16 %v401, %v399
    %v484 = vpack.c.b16 %v404, %v402
    %v485 = vpack.c.b16 %v405, %v403
    %v486 = vpack.c.b16 %v408, %v406
    %v487 = vpack.c.b16 %v409, %v407
    %v488 = vpack.c.b16 %v412, %v410
    %v489 = vpack.c.b16 %v413, %v411
    %v490 = vpack.c.b16 %v416, %v414
    %v491 = vpack.c.b16 %v417, %v415
    %v492 = vpack.c.b16 %v420, %v418
    %v493 = vpack.c.b16 %v421, %v419
    %v494 = vpack.c.b16 %v424, %v422
    %v495 = vpack.c.b16 %v425, %v423
    %v496 = vpack.c.b16 %v428, %v426
    %v497 = vpack.c.b16 %v429, %v427
    %v498 = vpack.c.b16 %v432, %v430
    %v499 = vpack.c.b16 %v433, %v431
    %v500 = vpack.c.b16 %v436, %v434
    %v501 = vpack.c.b16 %v437, %v435
    %v598 = vunpack.c.l.b16 %v214
    %v599 = vunpack.c.l.b16 %v215
    %v600 = vunpack.c.l.b16 %v216
    %v601 = vunpack.c.l.b16 %v217
    %v602 = vunpack.c.l.b16 %v218
    %v603 = vunpack.c.l.b16 %v219
    %v604 = vunpack.c.l.b16 %v220
    %v605 = vunpack.c.l.b16 %v221
    %v606 = vunpack.c.l.b16 %v222
    %v607 = vunpack.c.l.b16 %v223
    %v608 = vunpack.c.l.b16 %v224
    %v609 = vunpack.c.l.b16 %v225
    %v610 = vunpack.c.l.b16 %v226
    %v611 = vunpack.c.l.b16 %v227
    %v612 = vunpack.c.l.b16 %v228
    %v613 = vunpack.c.l.b16 %v229
    %v614 = vunpack.c.l.b16 %v230
    %v615 = vunpack.c.l.b16 %v231
    %v616 = vunpack.c.l.b16 %v232
    %v617 = vunpack.c.l.b16 %v233
    %v618 = vunpack.c.l.b16 %v234
    %v619 = vunpack.c.l.b16 %v235
    %v620 = vunpack.c.l.b16 %v236
    %v621 = vunpack.c.l.b16 %v237
    %v622 = vunpack.c.l.b16 %v238
    %v623 = vunpack.c.l.b16 %v239
    %v624 = vunpack.c.l.b16 %v240
    %v625 = vunpack.c.l.b16 %v241
    %v626 = vunpack.c.l.b16 %v242
    %v627 = vunpack.c.l.b16 %v243
    %v628 = vunpack.c.l.b16 %v244
    %v629 = vunpack.c.l.b16 %v245
    %v630 = vpack.c.b16 %v599, %v598
    %v631 = vpack.c.b16 %v601, %v600
    %v632 = vpack.c.b16 %v603, %v602
    %v633 = vpack.c.b16 %v605, %v604
    %v634 = vpack.c.b16 %v607, %v606
    %v635 = vpack.c.b16 %v609, %v608
    %v636 = vpack.c.b16 %v611, %v610
    %v637 = vpack.c.b16 %v613, %v612
    %v638 = vpack.c.b16 %v615, %v614
    %v639 = vpack.c.b16 %v617, %v616
    %v640 = vpack.c.b16 %v619, %v618
    %v641 = vpack.c.b16 %v621, %v620
    %v642 = vpack.c.b16 %v623, %v622
    %v643 = vpack.c.b16 %v625, %v624
    %v644 = vpack.c.b16 %v627, %v626
    %v645 = vpack.c.b16 %v629, %v628
    %662 = vmatpush.bf16.msra.mxu0 %v637
    %663 = vmatpush.bf16.msra.mxu0 %v636
    %664 = vmatpush.bf16.msra.mxu0 %v635
    %665 = vmatpush.bf16.msra.mxu0 %v634
    %666 = vmatpush.bf16.msra.mxu0 %v633
    %667 = vmatpush.bf16.msra.mxu0 %v632
    %668 = vmatpush.bf16.msra.mxu0 %v631
    %669 = vmatpush.bf16.msra.mxu0 %v630
    %670 = vmatmul.bf16.gmra.mxu0 %v438
    %v671 = vpop.f32.mrf.mxu0
    %v672 = vadd.f32 0.0, %v671
    %v673 = vpop.f32.mrf.mxu0
    %v674 = vadd.f32 0.0, %v673
    %675 = vmatmul.bf16.gmra.mxu0 %v440
    %v676 = vpop.f32.mrf.mxu0
    %v677 = vadd.f32 0.0, %v676
    %v678 = vpop.f32.mrf.mxu0
    %v679 = vadd.f32 0.0, %v678
    %680 = vmatmul.bf16.gmra.mxu0 %v442
    %v681 = vpop.f32.mrf.mxu0
    %v682 = vadd.f32 0.0, %v681
    %v683 = vpop.f32.mrf.mxu0
    %v684 = vadd.f32 0.0, %v683
    %685 = vmatmul.bf16.gmra.mxu0 %v444
    %v686 = vpop.f32.mrf.mxu0
    %v687 = vadd.f32 0.0, %v686
    %v688 = vpop.f32.mrf.mxu0
    %v689 = vadd.f32 0.0, %v688
    %690 = vmatmul.bf16.gmra.mxu0 %v446
    %v691 = vpop.f32.mrf.mxu0
    %v692 = vadd.f32 0.0, %v691
    %v693 = vpop.f32.mrf.mxu0
    %v694 = vadd.f32 0.0, %v693
    %695 = vmatmul.bf16.gmra.mxu0 %v448
    %v696 = vpop.f32.mrf.mxu0
    %v697 = vadd.f32 0.0, %v696
    %v698 = vpop.f32.mrf.mxu0
    %v699 = vadd.f32 0.0, %v698
    %700 = vmatmul.bf16.gmra.mxu0 %v450
    %v701 = vpop.f32.mrf.mxu0
    %v702 = vadd.f32 0.0, %v701
    %v703 = vpop.f32.mrf.mxu0
    %v704 = vadd.f32 0.0, %v703
    %705 = vmatmul.bf16.gmra.mxu0 %v452
    %v706 = vpop.f32.mrf.mxu0
    %v707 = vadd.f32 0.0, %v706
    %v708 = vpop.f32.mrf.mxu0
    %v709 = vadd.f32 0.0, %v708
    %710 = vmatmul.bf16.gmra.mxu0 %v454
    %v711 = vpop.f32.mrf.mxu0
    %v712 = vadd.f32 0.0, %v711
    %v713 = vpop.f32.mrf.mxu0
    %v714 = vadd.f32 0.0, %v713
    %715 = vmatmul.bf16.gmra.mxu0 %v456
    %v716 = vpop.f32.mrf.mxu0
    %v717 = vadd.f32 0.0, %v716
    %v718 = vpop.f32.mrf.mxu0
    %v719 = vadd.f32 0.0, %v718
    %720 = vmatmul.bf16.gmra.mxu0 %v458
    %v721 = vpop.f32.mrf.mxu0
    %v722 = vadd.f32 0.0, %v721
    %v723 = vpop.f32.mrf.mxu0
    %v724 = vadd.f32 0.0, %v723
    %725 = vmatmul.bf16.gmra.mxu0 %v460
    %v726 = vpop.f32.mrf.mxu0
    %v727 = vadd.f32 0.0, %v726
    %v728 = vpop.f32.mrf.mxu0
    %v729 = vadd.f32 0.0, %v728
    %730 = vmatmul.bf16.gmra.mxu0 %v462
    %v731 = vpop.f32.mrf.mxu0
    %v732 = vadd.f32 0.0, %v731
    %v733 = vpop.f32.mrf.mxu0
    %v734 = vadd.f32 0.0, %v733
    %735 = vmatmul.bf16.gmra.mxu0 %v464
    %v736 = vpop.f32.mrf.mxu0
    %v737 = vadd.f32 0.0, %v736
    %v738 = vpop.f32.mrf.mxu0
    %v739 = vadd.f32 0.0, %v738
    %740 = vmatmul.bf16.gmra.mxu0 %v466
    %v741 = vpop.f32.mrf.mxu0
    %v742 = vadd.f32 0.0, %v741
    %v743 = vpop.f32.mrf.mxu0
    %v744 = vadd.f32 0.0, %v743
    %745 = vmatmul.bf16.gmra.mxu0 %v468
    %v746 = vpop.f32.mrf.mxu0
    %v747 = vadd.f32 0.0, %v746
    %v748 = vpop.f32.mrf.mxu0
    %v749 = vadd.f32 0.0, %v748
    %750 = vmatmul.bf16.gmra.mxu0 %v470
    %v751 = vpop.f32.mrf.mxu0
    %v752 = vadd.f32 0.0, %v751
    %v753 = vpop.f32.mrf.mxu0
    %v754 = vadd.f32 0.0, %v753
    %755 = vmatmul.bf16.gmra.mxu0 %v472
    %v756 = vpop.f32.mrf.mxu0
    %v757 = vadd.f32 0.0, %v756
    %v758 = vpop.f32.mrf.mxu0
    %v759 = vadd.f32 0.0, %v758
    %760 = vmatmul.bf16.gmra.mxu0 %v474
    %v761 = vpop.f32.mrf.mxu0
    %v762 = vadd.f32 0.0, %v761
    %v763 = vpop.f32.mrf.mxu0
    %v764 = vadd.f32 0.0, %v763
    %765 = vmatmul.bf16.gmra.mxu0 %v476
    %v766 = vpop.f32.mrf.mxu0
    %v767 = vadd.f32 0.0, %v766
    %v768 = vpop.f32.mrf.mxu0
    %v769 = vadd.f32 0.0, %v768
    %770 = vmatmul.bf16.gmra.mxu0 %v478
    %v771 = vpop.f32.mrf.mxu0
    %v772 = vadd.f32 0.0, %v771
    %v773 = vpop.f32.mrf.mxu0
    %v774 = vadd.f32 0.0, %v773
    %775 = vmatmul.bf16.gmra.mxu0 %v480
    %v776 = vpop.f32.mrf.mxu0
    %v777 = vadd.f32 0.0, %v776
    %v778 = vpop.f32.mrf.mxu0
    %v779 = vadd.f32 0.0, %v778
    %780 = vmatmul.bf16.gmra.mxu0 %v482
    %v781 = vpop.f32.mrf.mxu0
    %v782 = vadd.f32 0.0, %v781
    %v783 = vpop.f32.mrf.mxu0
    %v784 = vadd.f32 0.0, %v783
    %785 = vmatmul.bf16.gmra.mxu0 %v484
    %v786 = vpop.f32.mrf.mxu0
    %v787 = vadd.f32 0.0, %v786
    %v788 = vpop.f32.mrf.mxu0
    %v789 = vadd.f32 0.0, %v788
    %790 = vmatmul.bf16.gmra.mxu0 %v486
    %v791 = vpop.f32.mrf.mxu0
    %v792 = vadd.f32 0.0, %v791
    %v793 = vpop.f32.mrf.mxu0
    %v794 = vadd.f32 0.0, %v793
    %795 = vmatmul.bf16.gmra.mxu0 %v488
    %v796 = vpop.f32.mrf.mxu0
    %v797 = vadd.f32 0.0, %v796
    %v798 = vpop.f32.mrf.mxu0
    %v799 = vadd.f32 0.0, %v798
    %800 = vmatmul.bf16.gmra.mxu0 %v490
    %v801 = vpop.f32.mrf.mxu0
    %v802 = vadd.f32 0.0, %v801
    %v803 = vpop.f32.mrf.mxu0
    %v804 = vadd.f32 0.0, %v803
    %805 = vmatmul.bf16.gmra.mxu0 %v492
    %v806 = vpop.f32.mrf.mxu0
    %v807 = vadd.f32 0.0, %v806
    %v808 = vpop.f32.mrf.mxu0
    %v809 = vadd.f32 0.0, %v808
    %810 = vmatmul.bf16.gmra.mxu0 %v494
    %v811 = vpop.f32.mrf.mxu0
    %v812 = vadd.f32 0.0, %v811
    %v813 = vpop.f32.mrf.mxu0
    %v814 = vadd.f32 0.0, %v813
    %815 = vmatmul.bf16.gmra.mxu0 %v496
    %v816 = vpop.f32.mrf.mxu0
    %v817 = vadd.f32 0.0, %v816
    %v818 = vpop.f32.mrf.mxu0
    %v819 = vadd.f32 0.0, %v818
    %820 = vmatmul.bf16.gmra.mxu0 %v498
    %v821 = vpop.f32.mrf.mxu0
    %v822 = vadd.f32 0.0, %v821
    %v823 = vpop.f32.mrf.mxu0
    %v824 = vadd.f32 0.0, %v823
    %825 = vmatmul.bf16.gmra.mxu0 %v500
    %v826 = vpop.f32.mrf.mxu0
    %v827 = vadd.f32 0.0, %v826
    %v828 = vpop.f32.mrf.mxu0
    %v829 = vadd.f32 0.0, %v828
    %830 = vdwg.mxu0
    %831 = vmatpush.bf16.msra.mxu0 %v645
    %832 = vmatpush.bf16.msra.mxu0 %v644
    %833 = vmatpush.bf16.msra.mxu0 %v643
    %834 = vmatpush.bf16.msra.mxu0 %v642
    %835 = vmatpush.bf16.msra.mxu0 %v641
    %836 = vmatpush.bf16.msra.mxu0 %v640
    %837 = vmatpush.bf16.msra.mxu0 %v639
    %838 = vmatpush.bf16.msra.mxu0 %v638
    %839 = vmatmul.bf16.gmra.mxu0 %v439
    %v840 = vpop.f32.mrf.mxu0
    %v841 = vadd.f32 %v672, %v840
    %v842 = vpop.f32.mrf.mxu0
    %v843 = vadd.f32 %v674, %v842
    %844 = vmatmul.bf16.gmra.mxu0 %v441
    %v845 = vpop.f32.mrf.mxu0
    %v846 = vadd.f32 %v677, %v845
    %v847 = vpop.f32.mrf.mxu0
    %v848 = vadd.f32 %v679, %v847
    %849 = vmatmul.bf16.gmra.mxu0 %v443
    %v850 = vpop.f32.mrf.mxu0
    %v851 = vadd.f32 %v682, %v850
    %v852 = vpop.f32.mrf.mxu0
    %v853 = vadd.f32 %v684, %v852
    %854 = vmatmul.bf16.gmra.mxu0 %v445
    %v855 = vpop.f32.mrf.mxu0
    %v856 = vadd.f32 %v687, %v855
    %v857 = vpop.f32.mrf.mxu0
    %v858 = vadd.f32 %v689, %v857
    %859 = vmatmul.bf16.gmra.mxu0 %v447
    %v860 = vpop.f32.mrf.mxu0
    %v861 = vadd.f32 %v692, %v860
    %v862 = vpop.f32.mrf.mxu0
    %v863 = vadd.f32 %v694, %v862
    %864 = vmatmul.bf16.gmra.mxu0 %v449
    %v865 = vpop.f32.mrf.mxu0
    %v866 = vadd.f32 %v697, %v865
    %v867 = vpop.f32.mrf.mxu0
    %v868 = vadd.f32 %v699, %v867
    %869 = vmatmul.bf16.gmra.mxu0 %v451
    %v870 = vpop.f32.mrf.mxu0
    %v871 = vadd.f32 %v702, %v870
    %v872 = vpop.f32.mrf.mxu0
    %v873 = vadd.f32 %v704, %v872
    %874 = vmatmul.bf16.gmra.mxu0 %v453
    %v875 = vpop.f32.mrf.mxu0
    %v876 = vadd.f32 %v707, %v875
    %v877 = vpop.f32.mrf.mxu0
    %v878 = vadd.f32 %v709, %v877
    %879 = vmatmul.bf16.gmra.mxu0 %v455
    %v880 = vpop.f32.mrf.mxu0
    %v881 = vadd.f32 %v712, %v880
    %v882 = vpop.f32.mrf.mxu0
    %v883 = vadd.f32 %v714, %v882
    %884 = vmatmul.bf16.gmra.mxu0 %v457
    %v885 = vpop.f32.mrf.mxu0
    %v886 = vadd.f32 %v717, %v885
    %v887 = vpop.f32.mrf.mxu0
    %v888 = vadd.f32 %v719, %v887
    %889 = vmatmul.bf16.gmra.mxu0 %v459
    %v890 = vpop.f32.mrf.mxu0
    %v891 = vadd.f32 %v722, %v890
    %v892 = vpop.f32.mrf.mxu0
    %v893 = vadd.f32 %v724, %v892
    %894 = vmatmul.bf16.gmra.mxu0 %v461
    %v895 = vpop.f32.mrf.mxu0
    %v896 = vadd.f32 %v727, %v895
    %v897 = vpop.f32.mrf.mxu0
    %v898 = vadd.f32 %v729, %v897
    %899 = vmatmul.bf16.gmra.mxu0 %v463
    %v900 = vpop.f32.mrf.mxu0
    %v901 = vadd.f32 %v732, %v900
    %v902 = vpop.f32.mrf.mxu0
    %v903 = vadd.f32 %v734, %v902
    %904 = vmatmul.bf16.gmra.mxu0 %v465
    %v905 = vpop.f32.mrf.mxu0
    %v906 = vadd.f32 %v737, %v905
    %v907 = vpop.f32.mrf.mxu0
    %v908 = vadd.f32 %v739, %v907
    %909 = vmatmul.bf16.gmra.mxu0 %v467
    %v910 = vpop.f32.mrf.mxu0
    %v911 = vadd.f32 %v742, %v910
    %v912 = vpop.f32.mrf.mxu0
    %v913 = vadd.f32 %v744, %v912
    %914 = vmatmul.bf16.gmra.mxu0 %v469
    %v915 = vpop.f32.mrf.mxu0
    %v916 = vadd.f32 %v747, %v915
    %v917 = vpop.f32.mrf.mxu0
    %v918 = vadd.f32 %v749, %v917
    %919 = vmatmul.bf16.gmra.mxu0 %v471
    %v920 = vpop.f32.mrf.mxu0
    %v921 = vadd.f32 %v752, %v920
    %v922 = vpop.f32.mrf.mxu0
    %v923 = vadd.f32 %v754, %v922
    %924 = vmatmul.bf16.gmra.mxu0 %v473
    %v925 = vpop.f32.mrf.mxu0
    %v926 = vadd.f32 %v757, %v925
    %v927 = vpop.f32.mrf.mxu0
    %v928 = vadd.f32 %v759, %v927
    %929 = vmatmul.bf16.gmra.mxu0 %v475
    %v930 = vpop.f32.mrf.mxu0
    %v931 = vadd.f32 %v762, %v930
    %v932 = vpop.f32.mrf.mxu0
    %v933 = vadd.f32 %v764, %v932
    %934 = vmatmul.bf16.gmra.mxu0 %v477
    %v935 = vpop.f32.mrf.mxu0
    %v936 = vadd.f32 %v767, %v935
    %v937 = vpop.f32.mrf.mxu0
    %v938 = vadd.f32 %v769, %v937
    %939 = vmatmul.bf16.gmra.mxu0 %v479
    %v940 = vpop.f32.mrf.mxu0
    %v941 = vadd.f32 %v772, %v940
    %v942 = vpop.f32.mrf.mxu0
    %v943 = vadd.f32 %v774, %v942
    %944 = vmatmul.bf16.gmra.mxu0 %v481
    %v945 = vpop.f32.mrf.mxu0
    %v946 = vadd.f32 %v777, %v945
    %v947 = vpop.f32.mrf.mxu0
    %v948 = vadd.f32 %v779, %v947
    %949 = vmatmul.bf16.gmra.mxu0 %v483
    %v950 = vpop.f32.mrf.mxu0
    %v951 = vadd.f32 %v782, %v950
    %v952 = vpop.f32.mrf.mxu0
    %v953 = vadd.f32 %v784, %v952
    %954 = vmatmul.bf16.gmra.mxu0 %v485
    %v955 = vpop.f32.mrf.mxu0
    %v956 = vadd.f32 %v787, %v955
    %v957 = vpop.f32.mrf.mxu0
    %v958 = vadd.f32 %v789, %v957
    %959 = vmatmul.bf16.gmra.mxu0 %v487
    %v960 = vpop.f32.mrf.mxu0
    %v961 = vadd.f32 %v792, %v960
    %v962 = vpop.f32.mrf.mxu0
    %v963 = vadd.f32 %v794, %v962
    %964 = vmatmul.bf16.gmra.mxu0 %v489
    %v965 = vpop.f32.mrf.mxu0
    %v966 = vadd.f32 %v797, %v965
    %v967 = vpop.f32.mrf.mxu0
    %v968 = vadd.f32 %v799, %v967
    %969 = vmatmul.bf16.gmra.mxu0 %v491
    %v970 = vpop.f32.mrf.mxu0
    %v971 = vadd.f32 %v802, %v970
    %v972 = vpop.f32.mrf.mxu0
    %v973 = vadd.f32 %v804, %v972
    %974 = vmatmul.bf16.gmra.mxu0 %v493
    %v975 = vpop.f32.mrf.mxu0
    %v976 = vadd.f32 %v807, %v975
    %v977 = vpop.f32.mrf.mxu0
    %v978 = vadd.f32 %v809, %v977
    %979 = vmatmul.bf16.gmra.mxu0 %v495
    %v980 = vpop.f32.mrf.mxu0
    %v981 = vadd.f32 %v812, %v980
    %v982 = vpop.f32.mrf.mxu0
    %v983 = vadd.f32 %v814, %v982
    %984 = vmatmul.bf16.gmra.mxu0 %v497
    %v985 = vpop.f32.mrf.mxu0
    %v986 = vadd.f32 %v817, %v985
    %v987 = vpop.f32.mrf.mxu0
    %v988 = vadd.f32 %v819, %v987
    %989 = vmatmul.bf16.gmra.mxu0 %v499
    %v990 = vpop.f32.mrf.mxu0
    %v991 = vadd.f32 %v822, %v990
    %v992 = vpop.f32.mrf.mxu0
    %v993 = vadd.f32 %v824, %v992
    %994 = vmatmul.bf16.gmra.mxu0 %v501
    %v995 = vpop.f32.mrf.mxu0
    %v996 = vadd.f32 %v827, %v995
    %v997 = vpop.f32.mrf.mxu0
    %v998 = vadd.f32 %v829, %v997
    %999 = vdwg.mxu0
    %v1000 = vadd.f32 %v86, %v841
    %v1001 = vadd.f32 %v87, %v843
    %v1002 = vadd.f32 %v88, %v846
    %v1003 = vadd.f32 %v89, %v848
    %v1004 = vadd.f32 %v90, %v851
    %v1005 = vadd.f32 %v91, %v853
    %v1006 = vadd.f32 %v92, %v856
    %v1007 = vadd.f32 %v93, %v858
    %v1008 = vadd.f32 %v94, %v861
    %v1009 = vadd.f32 %v95, %v863
    %v1010 = vadd.f32 %v96, %v866
    %v1011 = vadd.f32 %v97, %v868
    %v1012 = vadd.f32 %v98, %v871
    %v1013 = vadd.f32 %v99, %v873
    %v1014 = vadd.f32 %v100, %v876
    %v1015 = vadd.f32 %v101, %v878
    %v1016 = vadd.f32 %v102, %v881
    %v1017 = vadd.f32 %v103, %v883
    %v1018 = vadd.f32 %v104, %v886
    %v1019 = vadd.f32 %v105, %v888
    %v1020 = vadd.f32 %v106, %v891
    %v1021 = vadd.f32 %v107, %v893
    %v1022 = vadd.f32 %v108, %v896
    %v1023 = vadd.f32 %v109, %v898
    %v1024 = vadd.f32 %v110, %v901
    %v1025 = vadd.f32 %v111, %v903
    %v1026 = vadd.f32 %v112, %v906
    %v1027 = vadd.f32 %v113, %v908
    %v1028 = vadd.f32 %v114, %v911
    %v1029 = vadd.f32 %v115, %v913
    %v1030 = vadd.f32 %v116, %v916
    %v1031 = vadd.f32 %v117, %v918
    %v1032 = vadd.f32 %v118, %v921
    %v1033 = vadd.f32 %v119, %v923
    %v1034 = vadd.f32 %v120, %v926
    %v1035 = vadd.f32 %v121, %v928
    %v1036 = vadd.f32 %v122, %v931
    %v1037 = vadd.f32 %v123, %v933
    %v1038 = vadd.f32 %v124, %v936
    %v1039 = vadd.f32 %v125, %v938
    %v1040 = vadd.f32 %v126, %v941
    %v1041 = vadd.f32 %v127, %v943
    %v1042 = vadd.f32 %v128, %v946
    %v1043 = vadd.f32 %v129, %v948
    %v1044 = vadd.f32 %v130, %v951
    %v1045 = vadd.f32 %v131, %v953
    %v1046 = vadd.f32 %v132, %v956
    %v1047 = vadd.f32 %v133, %v958
    %v1048 = vadd.f32 %v134, %v961
    %v1049 = vadd.f32 %v135, %v963
    %v1050 = vadd.f32 %v136, %v966
    %v1051 = vadd.f32 %v137, %v968
    %v1052 = vadd.f32 %v138, %v971
    %v1053 = vadd.f32 %v139, %v973
    %v1054 = vadd.f32 %v140, %v976
    %v1055 = vadd.f32 %v141, %v978
    %v1056 = vadd.f32 %v142, %v981
    %v1057 = vadd.f32 %v143, %v983
    %v1058 = vadd.f32 %v144, %v986
    %v1059 = vadd.f32 %v145, %v988
    %v1060 = vadd.f32 %v146, %v991
    %v1061 = vadd.f32 %v147, %v993
    %v1062 = vadd.f32 %v148, %v996
    %v1063 = vadd.f32 %v149, %v998
    %1064 = vst [vmem:[#allocation2] sm:$0xff] %v1000
    %1065 = vst [vmem:[#allocation2 + $0x8] sm:$0xff] %v1001
    %1066 = vst [vmem:[#allocation2 + $0x10] sm:$0xff] %v1002
    %1067 = vst [vmem:[#allocation2 + $0x18] sm:$0xff] %v1003
    %1068 = vst [vmem:[#allocation2 + $0x20] sm:$0xff] %v1004
    %1069 = vst [vmem:[#allocation2 + $0x28] sm:$0xff] %v1005
    %1070 = vst [vmem:[#allocation2 + $0x30] sm:$0xff] %v1006
    %1071 = vst [vmem:[#allocation2 + $0x38] sm:$0xff] %v1007
    %1072 = vst [vmem:[#allocation2 + $0x40] sm:$0xff] %v1008
    %1073 = vst [vmem:[#allocation2 + $0x48] sm:$0xff] %v1009
    %1074 = vst [vmem:[#allocation2 + $0x50] sm:$0xff] %v1010
    %1075 = vst [vmem:[#allocation2 + $0x58] sm:$0xff] %v1011
    %1076 = vst [vmem:[#allocation2 + $0x60] sm:$0xff] %v1012
    %1077 = vst [vmem:[#allocation2 + $0x68] sm:$0xff] %v1013
    %1078 = vst [vmem:[#allocation2 + $0x70] sm:$0xff] %v1014
    %1079 = vst [vmem:[#allocation2 + $0x78] sm:$0xff] %v1015
    %1080 = vst [vmem:[#allocation2 + $0x80] sm:$0xff] %v1016
    %1081 = vst [vmem:[#allocation2 + $0x88] sm:$0xff] %v1017
    %1082 = vst [vmem:[#allocation2 + $0x90] sm:$0xff] %v1018
    %1083 = vst [vmem:[#allocation2 + $0x98] sm:$0xff] %v1019
    %1084 = vst [vmem:[#allocation2 + $0xa0] sm:$0xff] %v1020
    %1085 = vst [vmem:[#allocation2 + $0xa8] sm:$0xff] %v1021
    %1086 = vst [vmem:[#allocation2 + $0xb0] sm:$0xff] %v1022
    %1087 = vst [vmem:[#allocation2 + $0xb8] sm:$0xff] %v1023
    %1088 = vst [vmem:[#allocation2 + $0xc0] sm:$0xff] %v1024
    %1089 = vst [vmem:[#allocation2 + $0xc8] sm:$0xff] %v1025
    %1090 = vst [vmem:[#allocation2 + $0xd0] sm:$0xff] %v1026
    %1091 = vst [vmem:[#allocation2 + $0xd8] sm:$0xff] %v1027
    %1092 = vst [vmem:[#allocation2 + $0xe0] sm:$0xff] %v1028
    %1093 = vst [vmem:[#allocation2 + $0xe8] sm:$0xff] %v1029
    %1094 = vst [vmem:[#allocation2 + $0xf0] sm:$0xff] %v1030
    %1095 = vst [vmem:[#allocation2 + $0xf8] sm:$0xff] %v1031
    %1096 = vst [vmem:[#allocation2 + $0x100] sm:$0xff] %v1032
    %1097 = vst [vmem:[#allocation2 + $0x108] sm:$0xff] %v1033
    %1098 = vst [vmem:[#allocation2 + $0x110] sm:$0xff] %v1034
    %1099 = vst [vmem:[#allocation2 + $0x118] sm:$0xff] %v1035
    %1100 = vst [vmem:[#allocation2 + $0x120] sm:$0xff] %v1036
    %1101 = vst [vmem:[#allocation2 + $0x128] sm:$0xff] %v1037
    %1102 = vst [vmem:[#allocation2 + $0x130] sm:$0xff] %v1038
    %1103 = vst [vmem:[#allocation2 + $0x138] sm:$0xff] %v1039
    %1104 = vst [vmem:[#allocation2 + $0x140] sm:$0xff] %v1040
    %1105 = vst [vmem:[#allocation2 + $0x148] sm:$0xff] %v1041
    %1106 = vst [vmem:[#allocation2 + $0x150] sm:$0xff] %v1042
    %1107 = vst [vmem:[#allocation2 + $0x158] sm:$0xff] %v1043
    %1108 = vst [vmem:[#allocation2 + $0x160] sm:$0xff] %v1044
    %1109 = vst [vmem:[#allocation2 + $0x168] sm:$0xff] %v1045
    %1110 = vst [vmem:[#allocation2 + $0x170] sm:$0xff] %v1046
    %1111 = vst [vmem:[#allocation2 + $0x178] sm:$0xff] %v1047
    %1112 = vst [vmem:[#allocation2 + $0x180] sm:$0xff] %v1048
    %1113 = vst [vmem:[#allocation2 + $0x188] sm:$0xff] %v1049
    %1114 = vst [vmem:[#allocation2 + $0x190] sm:$0xff] %v1050
    %1115 = vst [vmem:[#allocation2 + $0x198] sm:$0xff] %v1051
    %1116 = vst [vmem:[#allocation2 + $0x1a0] sm:$0xff] %v1052
    %1117 = vst [vmem:[#allocation2 + $0x1a8] sm:$0xff] %v1053
    %1118 = vst [vmem:[#allocation2 + $0x1b0] sm:$0xff] %v1054
    %1119 = vst [vmem:[#allocation2 + $0x1b8] sm:$0xff] %v1055
    %1120 = vst [vmem:[#allocation2 + $0x1c0] sm:$0xff] %v1056
    %1121 = vst [vmem:[#allocation2 + $0x1c8] sm:$0xff] %v1057
    %1122 = vst [vmem:[#allocation2 + $0x1d0] sm:$0xff] %v1058
    %1123 = vst [vmem:[#allocation2 + $0x1d8] sm:$0xff] %v1059
    %1124 = vst [vmem:[#allocation2 + $0x1e0] sm:$0xff] %v1060
    %1125 = vst [vmem:[#allocation2 + $0x1e8] sm:$0xff] %v1061
    %1126 = vst [vmem:[#allocation2 + $0x1f0] sm:$0xff] %v1062
    %1127 = vst [vmem:[#allocation2 + $0x1f8] sm:$0xff] %v1063
    // Predicated region
    $region22: #{conv_bn.1} parent=1 // pred_check
      %p1128 = pneg %p18
    $region23: #{conv_bn.1} parent=1 // pred_check_branch
      %1130 = sbr.rel (%p1128) target = $region25
    $region24: #{conv_bn.1} parent=1 // pred_region
      %v1131 = vld [vmem:[#allocation2] sm:$0xff]
      %v1132 = vld [vmem:[#allocation2 + $0x8] sm:$0xff]
      %v1133 = vld [vmem:[#allocation2 + $0x10] sm:$0xff]
      %v1134 = vld [vmem:[#allocation2 + $0x18] sm:$0xff]
      %v1135 = vld [vmem:[#allocation2 + $0x20] sm:$0xff]
      %v1136 = vld [vmem:[#allocation2 + $0x28] sm:$0xff]
      %v1137 = vld [vmem:[#allocation2 + $0x30] sm:$0xff]
      %v1138 = vld [vmem:[#allocation2 + $0x38] sm:$0xff]
      %v1139 = vld [vmem:[#allocation2 + $0x40] sm:$0xff]
      %v1140 = vld [vmem:[#allocation2 + $0x48] sm:$0xff]
      %v1141 = vld [vmem:[#allocation2 + $0x50] sm:$0xff]
      %v1142 = vld [vmem:[#allocation2 + $0x58] sm:$0xff]
      %v1143 = vld [vmem:[#allocation2 + $0x60] sm:$0xff]
      %v1144 = vld [vmem:[#allocation2 + $0x68] sm:$0xff]
      %v1145 = vld [vmem:[#allocation2 + $0x70] sm:$0xff]
      %v1146 = vld [vmem:[#allocation2 + $0x78] sm:$0xff]
      %v1147 = vld [vmem:[#allocation2 + $0x80] sm:$0xff]
      %v1148 = vld [vmem:[#allocation2 + $0x88] sm:$0xff]
      %v1149 = vld [vmem:[#allocation2 + $0x90] sm:$0xff]
      %v1150 = vld [vmem:[#allocation2 + $0x98] sm:$0xff]
      %v1151 = vld [vmem:[#allocation2 + $0xa0] sm:$0xff]
      %v1152 = vld [vmem:[#allocation2 + $0xa8] sm:$0xff]
      %v1153 = vld [vmem:[#allocation2 + $0xb0] sm:$0xff]
      %v1154 = vld [vmem:[#allocation2 + $0xb8] sm:$0xff]
      %v1155 = vld [vmem:[#allocation2 + $0xc0] sm:$0xff]
      %v1156 = vld [vmem:[#allocation2 + $0xc8] sm:$0xff]
      %v1157 = vld [vmem:[#allocation2 + $0xd0] sm:$0xff]
      %v1158 = vld [vmem:[#allocation2 + $0xd8] sm:$0xff]
      %v1159 = vld [vmem:[#allocation2 + $0xe0] sm:$0xff]
      %v1160 = vld [vmem:[#allocation2 + $0xe8] sm:$0xff]
      %v1161 = vld [vmem:[#allocation2 + $0xf0] sm:$0xff]
      %v1162 = vld [vmem:[#allocation2 + $0xf8] sm:$0xff]
      %v1163 = vld [vmem:[#allocation2 + $0x100] sm:$0xff]
      %v1164 = vld [vmem:[#allocation2 + $0x108] sm:$0xff]
      %v1165 = vld [vmem:[#allocation2 + $0x110] sm:$0xff]
      %v1166 = vld [vmem:[#allocation2 + $0x118] sm:$0xff]
      %v1167 = vld [vmem:[#allocation2 + $0x120] sm:$0xff]
      %v1168 = vld [vmem:[#allocation2 + $0x128] sm:$0xff]
      %v1169 = vld [vmem:[#allocation2 + $0x130] sm:$0xff]
      %v1170 = vld [vmem:[#allocation2 + $0x138] sm:$0xff]
      %v1171 = vld [vmem:[#allocation2 + $0x140] sm:$0xff]
      %v1172 = vld [vmem:[#allocation2 + $0x148] sm:$0xff]
      %v1173 = vld [vmem:[#allocation2 + $0x150] sm:$0xff]
      %v1174 = vld [vmem:[#allocation2 + $0x158] sm:$0xff]
      %v1175 = vld [vmem:[#allocation2 + $0x160] sm:$0xff]
      %v1176 = vld [vmem:[#allocation2 + $0x168] sm:$0xff]
      %v1177 = vld [vmem:[#allocation2 + $0x170] sm:$0xff]
      %v1178 = vld [vmem:[#allocation2 + $0x178] sm:$0xff]
      %v1179 = vld [vmem:[#allocation2 + $0x180] sm:$0xff]
      %v1180 = vld [vmem:[#allocation2 + $0x188] sm:$0xff]
      %v1181 = vld [vmem:[#allocation2 + $0x190] sm:$0xff]
      %v1182 = vld [vmem:[#allocation2 + $0x198] sm:$0xff]
      %v1183 = vld [vmem:[#allocation2 + $0x1a0] sm:$0xff]
      %v1184 = vld [vmem:[#allocation2 + $0x1a8] sm:$0xff]
      %v1185 = vld [vmem:[#allocation2 + $0x1b0] sm:$0xff]
      %v1186 = vld [vmem:[#allocation2 + $0x1b8] sm:$0xff]
      %v1187 = vld [vmem:[#allocation2 + $0x1c0] sm:$0xff]
      %v1188 = vld [vmem:[#allocation2 + $0x1c8] sm:$0xff]
      %v1189 = vld [vmem:[#allocation2 + $0x1d0] sm:$0xff]
      %v1190 = vld [vmem:[#allocation2 + $0x1d8] sm:$0xff]
      %v1191 = vld [vmem:[#allocation2 + $0x1e0] sm:$0xff]
      %v1192 = vld [vmem:[#allocation2 + $0x1e8] sm:$0xff]
      %v1193 = vld [vmem:[#allocation2 + $0x1f0] sm:$0xff]
      %v1194 = vld [vmem:[#allocation2 + $0x1f8] sm:$0xff]
      %v1195 = vld [vmem:[%s2] sm:$0x1]
      %v1197 = vperm.slane %v1195, 0
      %v1199 = vmul.f32 %v1131, %v1197
      %v1200 = vmul.f32 %v1132, %v1197
      %v1201 = vmul.f32 %v1133, %v1197
      %v1202 = vmul.f32 %v1134, %v1197
      %v1203 = vmul.f32 %v1135, %v1197
      %v1204 = vmul.f32 %v1136, %v1197
      %v1205 = vmul.f32 %v1137, %v1197
      %v1206 = vmul.f32 %v1138, %v1197
      %v1207 = vmul.f32 %v1139, %v1197
      %v1208 = vmul.f32 %v1140, %v1197
      %v1209 = vmul.f32 %v1141, %v1197
      %v1210 = vmul.f32 %v1142, %v1197
      %v1211 = vmul.f32 %v1143, %v1197
      %v1212 = vmul.f32 %v1144, %v1197
      %v1213 = vmul.f32 %v1145, %v1197
      %v1214 = vmul.f32 %v1146, %v1197
      %v1215 = vmul.f32 %v1147, %v1197
      %v1216 = vmul.f32 %v1148, %v1197
      %v1217 = vmul.f32 %v1149, %v1197
      %v1218 = vmul.f32 %v1150, %v1197
      %v1219 = vmul.f32 %v1151, %v1197
      %v1220 = vmul.f32 %v1152, %v1197
      %v1221 = vmul.f32 %v1153, %v1197
      %v1222 = vmul.f32 %v1154, %v1197
      %v1223 = vmul.f32 %v1155, %v1197
      %v1224 = vmul.f32 %v1156, %v1197
      %v1225 = vmul.f32 %v1157, %v1197
      %v1226 = vmul.f32 %v1158, %v1197
      %v1227 = vmul.f32 %v1159, %v1197
      %v1228 = vmul.f32 %v1160, %v1197
      %v1229 = vmul.f32 %v1161, %v1197
      %v1230 = vmul.f32 %v1162, %v1197
      %v1231 = vmul.f32 %v1163, %v1197
      %v1232 = vmul.f32 %v1164, %v1197
      %v1233 = vmul.f32 %v1165, %v1197
      %v1234 = vmul.f32 %v1166, %v1197
      %v1235 = vmul.f32 %v1167, %v1197
      %v1236 = vmul.f32 %v1168, %v1197
      %v1237 = vmul.f32 %v1169, %v1197
      %v1238 = vmul.f32 %v1170, %v1197
      %v1239 = vmul.f32 %v1171, %v1197
      %v1240 = vmul.f32 %v1172, %v1197
      %v1241 = vmul.f32 %v1173, %v1197
      %v1242 = vmul.f32 %v1174, %v1197
      %v1243 = vmul.f32 %v1175, %v1197
      %v1244 = vmul.f32 %v1176, %v1197
      %v1245 = vmul.f32 %v1177, %v1197
      %v1246 = vmul.f32 %v1178, %v1197
      %v1247 = vmul.f32 %v1179, %v1197
      %v1248 = vmul.f32 %v1180, %v1197
      %v1249 = vmul.f32 %v1181, %v1197
      %v1250 = vmul.f32 %v1182, %v1197
      %v1251 = vmul.f32 %v1183, %v1197
      %v1252 = vmul.f32 %v1184, %v1197
      %v1253 = vmul.f32 %v1185, %v1197
      %v1254 = vmul.f32 %v1186, %v1197
      %v1255 = vmul.f32 %v1187, %v1197
      %v1256 = vmul.f32 %v1188, %v1197
      %v1257 = vmul.f32 %v1189, %v1197
      %v1258 = vmul.f32 %v1190, %v1197
      %v1259 = vmul.f32 %v1191, %v1197
      %v1260 = vmul.f32 %v1192, %v1197
      %v1261 = vmul.f32 %v1193, %v1197
      %v1262 = vmul.f32 %v1194, %v1197
      %v1263 = vld [vmem:[%s3] sm:$0x1]
      %v1265 = vperm.slane %v1263, 0
      %v1267 = vadd.f32 %v1199, %v1265
      %v1268 = vadd.f32 %v1200, %v1265
      %v1269 = vadd.f32 %v1201, %v1265
      %v1270 = vadd.f32 %v1202, %v1265
      %v1271 = vadd.f32 %v1203, %v1265
      %v1272 = vadd.f32 %v1204, %v1265
      %v1273 = vadd.f32 %v1205, %v1265
      %v1274 = vadd.f32 %v1206, %v1265
      %v1275 = vadd.f32 %v1207, %v1265
      %v1276 = vadd.f32 %v1208, %v1265
      %v1277 = vadd.f32 %v1209, %v1265
      %v1278 = vadd.f32 %v1210, %v1265
      %v1279 = vadd.f32 %v1211, %v1265
      %v1280 = vadd.f32 %v1212, %v1265
      %v1281 = vadd.f32 %v1213, %v1265
      %v1282 = vadd.f32 %v1214, %v1265
      %v1283 = vadd.f32 %v1215, %v1265
      %v1284 = vadd.f32 %v1216, %v1265
      %v1285 = vadd.f32 %v1217, %v1265
      %v1286 = vadd.f32 %v1218, %v1265
      %v1287 = vadd.f32 %v1219, %v1265
      %v1288 = vadd.f32 %v1220, %v1265
      %v1289 = vadd.f32 %v1221, %v1265
      %v1290 = vadd.f32 %v1222, %v1265
      %v1291 = vadd.f32 %v1223, %v1265
      %v1292 = vadd.f32 %v1224, %v1265
      %v1293 = vadd.f32 %v1225, %v1265
      %v1294 = vadd.f32 %v1226, %v1265
      %v1295 = vadd.f32 %v1227, %v1265
      %v1296 = vadd.f32 %v1228, %v1265
      %v1297 = vadd.f32 %v1229, %v1265
      %v1298 = vadd.f32 %v1230, %v1265
      %v1299 = vadd.f32 %v1231, %v1265
      %v1300 = vadd.f32 %v1232, %v1265
      %v1301 = vadd.f32 %v1233, %v1265
      %v1302 = vadd.f32 %v1234, %v1265
      %v1303 = vadd.f32 %v1235, %v1265
      %v1304 = vadd.f32 %v1236, %v1265
      %v1305 = vadd.f32 %v1237, %v1265
      %v1306 = vadd.f32 %v1238, %v1265
      %v1307 = vadd.f32 %v1239, %v1265
      %v1308 = vadd.f32 %v1240, %v1265
      %v1309 = vadd.f32 %v1241, %v1265
      %v1310 = vadd.f32 %v1242, %v1265
      %v1311 = vadd.f32 %v1243, %v1265
      %v1312 = vadd.f32 %v1244, %v1265
      %v1313 = vadd.f32 %v1245, %v1265
      %v1314 = vadd.f32 %v1246, %v1265
      %v1315 = vadd.f32 %v1247, %v1265
      %v1316 = vadd.f32 %v1248, %v1265
      %v1317 = vadd.f32 %v1249, %v1265
      %v1318 = vadd.f32 %v1250, %v1265
      %v1319 = vadd.f32 %v1251, %v1265
      %v1320 = vadd.f32 %v1252, %v1265
      %v1321 = vadd.f32 %v1253, %v1265
      %v1322 = vadd.f32 %v1254, %v1265
      %v1323 = vadd.f32 %v1255, %v1265
      %v1324 = vadd.f32 %v1256, %v1265
      %v1325 = vadd.f32 %v1257, %v1265
      %v1326 = vadd.f32 %v1258, %v1265
      %v1327 = vadd.f32 %v1259, %v1265
      %v1328 = vadd.f32 %v1260, %v1265
      %v1329 = vadd.f32 %v1261, %v1265
      %v1330 = vadd.f32 %v1262, %v1265
      %v1331 = vmax.f32 %v1267, 0.0
      %v1332 = vmax.f32 %v1268, 0.0
      %v1333 = vmax.f32 %v1269, 0.0
      %v1334 = vmax.f32 %v1270, 0.0
      %v1335 = vmax.f32 %v1271, 0.0
      %v1336 = vmax.f32 %v1272, 0.0
      %v1337 = vmax.f32 %v1273, 0.0
      %v1338 = vmax.f32 %v1274, 0.0
      %v1339 = vmax.f32 %v1275, 0.0
      %v1340 = vmax.f32 %v1276, 0.0
      %v1341 = vmax.f32 %v1277, 0.0
      %v1342 = vmax.f32 %v1278, 0.0
      %v1343 = vmax.f32 %v1279, 0.0
      %v1344 = vmax.f32 %v1280, 0.0
      %v1345 = vmax.f32 %v1281, 0.0
      %v1346 = vmax.f32 %v1282, 0.0
      %v1347 = vmax.f32 %v1283, 0.0
      %v1348 = vmax.f32 %v1284, 0.0
      %v1349 = vmax.f32 %v1285, 0.0
      %v1350 = vmax.f32 %v1286, 0.0
      %v1351 = vmax.f32 %v1287, 0.0
      %v1352 = vmax.f32 %v1288, 0.0
      %v1353 = vmax.f32 %v1289, 0.0
      %v1354 = vmax.f32 %v1290, 0.0
      %v1355 = vmax.f32 %v1291, 0.0
      %v1356 = vmax.f32 %v1292, 0.0
      %v1357 = vmax.f32 %v1293, 0.0
      %v1358 = vmax.f32 %v1294, 0.0
      %v1359 = vmax.f32 %v1295, 0.0
      %v1360 = vmax.f32 %v1296, 0.0
      %v1361 = vmax.f32 %v1297, 0.0
      %v1362 = vmax.f32 %v1298, 0.0
      %v1363 = vmax.f32 %v1299, 0.0
      %v1364 = vmax.f32 %v1300, 0.0
      %v1365 = vmax.f32 %v1301, 0.0
      %v1366 = vmax.f32 %v1302, 0.0
      %v1367 = vmax.f32 %v1303, 0.0
      %v1368 = vmax.f32 %v1304, 0.0
      %v1369 = vmax.f32 %v1305, 0.0
      %v1370 = vmax.f32 %v1306, 0.0
      %v1371 = vmax.f32 %v1307, 0.0
      %v1372 = vmax.f32 %v1308, 0.0
      %v1373 = vmax.f32 %v1309, 0.0
      %v1374 = vmax.f32 %v1310, 0.0
      %v1375 = vmax.f32 %v1311, 0.0
      %v1376 = vmax.f32 %v1312, 0.0
      %v1377 = vmax.f32 %v1313, 0.0
      %v1378 = vmax.f32 %v1314, 0.0
      %v1379 = vmax.f32 %v1315, 0.0
      %v1380 = vmax.f32 %v1316, 0.0
      %v1381 = vmax.f32 %v1317, 0.0
      %v1382 = vmax.f32 %v1318, 0.0
      %v1383 = vmax.f32 %v1319, 0.0
      %v1384 = vmax.f32 %v1320, 0.0
      %v1385 = vmax.f32 %v1321, 0.0
      %v1386 = vmax.f32 %v1322, 0.0
      %v1387 = vmax.f32 %v1323, 0.0
      %v1388 = vmax.f32 %v1324, 0.0
      %v1389 = vmax.f32 %v1325, 0.0
      %v1390 = vmax.f32 %v1326, 0.0
      %v1391 = vmax.f32 %v1327, 0.0
      %v1392 = vmax.f32 %v1328, 0.0
      %v1393 = vmax.f32 %v1329, 0.0
      %v1394 = vmax.f32 %v1330, 0.0
      %v1395 = vpack.c.bf16 %v1331, %v1331
      %v1396 = vpack.c.bf16 %v1332, %v1332
      %v1397 = vpack.c.bf16 %v1333, %v1333
      %v1398 = vpack.c.bf16 %v1334, %v1334
      %v1399 = vpack.c.bf16 %v1335, %v1335
      %v1400 = vpack.c.bf16 %v1336, %v1336
      %v1401 = vpack.c.bf16 %v1337, %v1337
      %v1402 = vpack.c.bf16 %v1338, %v1338
      %v1403 = vpack.c.bf16 %v1339, %v1339
      %v1404 = vpack.c.bf16 %v1340, %v1340
      %v1405 = vpack.c.bf16 %v1341, %v1341
      %v1406 = vpack.c.bf16 %v1342, %v1342
      %v1407 = vpack.c.bf16 %v1343, %v1343
      %v1408 = vpack.c.bf16 %v1344, %v1344
      %v1409 = vpack.c.bf16 %v1345, %v1345
      %v1410 = vpack.c.bf16 %v1346, %v1346
      %v1411 = vpack.c.bf16 %v1347, %v1347
      %v1412 = vpack.c.bf16 %v1348, %v1348
      %v1413 = vpack.c.bf16 %v1349, %v1349
      %v1414 = vpack.c.bf16 %v1350, %v1350
      %v1415 = vpack.c.bf16 %v1351, %v1351
      %v1416 = vpack.c.bf16 %v1352, %v1352
      %v1417 = vpack.c.bf16 %v1353, %v1353
      %v1418 = vpack.c.bf16 %v1354, %v1354
      %v1419 = vpack.c.bf16 %v1355, %v1355
      %v1420 = vpack.c.bf16 %v1356, %v1356
      %v1421 = vpack.c.bf16 %v1357, %v1357
      %v1422 = vpack.c.bf16 %v1358, %v1358
      %v1423 = vpack.c.bf16 %v1359, %v1359
      %v1424 = vpack.c.bf16 %v1360, %v1360
      %v1425 = vpack.c.bf16 %v1361, %v1361
      %v1426 = vpack.c.bf16 %v1362, %v1362
      %v1427 = vpack.c.bf16 %v1363, %v1363
      %v1428 = vpack.c.bf16 %v1364, %v1364
      %v1429 = vpack.c.bf16 %v1365, %v1365
      %v1430 = vpack.c.bf16 %v1366, %v1366
      %v1431 = vpack.c.bf16 %v1367, %v1367
      %v1432 = vpack.c.bf16 %v1368, %v1368
      %v1433 = vpack.c.bf16 %v1369, %v1369
      %v1434 = vpack.c.bf16 %v1370, %v1370
      %v1435 = vpack.c.bf16 %v1371, %v1371
      %v1436 = vpack.c.bf16 %v1372, %v1372
      %v1437 = vpack.c.bf16 %v1373, %v1373
      %v1438 = vpack.c.bf16 %v1374, %v1374
      %v1439 = vpack.c.bf16 %v1375, %v1375
      %v1440 = vpack.c.bf16 %v1376, %v1376
      %v1441 = vpack.c.bf16 %v1377, %v1377
      %v1442 = vpack.c.bf16 %v1378, %v1378
      %v1443 = vpack.c.bf16 %v1379, %v1379
      %v1444 = vpack.c.bf16 %v1380, %v1380
      %v1445 = vpack.c.bf16 %v1381, %v1381
      %v1446 = vpack.c.bf16 %v1382, %v1382
      %v1447 = vpack.c.bf16 %v1383, %v1383
      %v1448 = vpack.c.bf16 %v1384, %v1384
      %v1449 = vpack.c.bf16 %v1385, %v1385
      %v1450 = vpack.c.bf16 %v1386, %v1386
      %v1451 = vpack.c.bf16 %v1387, %v1387
      %v1452 = vpack.c.bf16 %v1388, %v1388
      %v1453 = vpack.c.bf16 %v1389, %v1389
      %v1454 = vpack.c.bf16 %v1390, %v1390
      %v1455 = vpack.c.bf16 %v1391, %v1391
      %v1456 = vpack.c.bf16 %v1392, %v1392
      %v1457 = vpack.c.bf16 %v1393, %v1393
      %v1458 = vpack.c.bf16 %v1394, %v1394
      %1459 = vst [vmem:[#allocation3] sm:$0xf] %v1395
      %1460 = vst [vmem:[#allocation3 + $0x4] sm:$0xf] %v1396
      %1461 = vst [vmem:[#allocation3 + $0x8] sm:$0xf] %v1397
      %1462 = vst [vmem:[#allocation3 + $0xc] sm:$0xf] %v1398
      %1463 = vst [vmem:[#allocation3 + $0x10] sm:$0xf] %v1399
      %1464 = vst [vmem:[#allocation3 + $0x14] sm:$0xf] %v1400
      %1465 = vst [vmem:[#allocation3 + $0x18] sm:$0xf] %v1401
      %1466 = vst [vmem:[#allocation3 + $0x1c] sm:$0xf] %v1402
      %1467 = vst [vmem:[#allocation3 + $0x20] sm:$0xf] %v1403
      %1468 = vst [vmem:[#allocation3 + $0x24] sm:$0xf] %v1404
      %1469 = vst [vmem:[#allocation3 + $0x28] sm:$0xf] %v1405
      %1470 = vst [vmem:[#allocation3 + $0x2c] sm:$0xf] %v1406
      %1471 = vst [vmem:[#allocation3 + $0x30] sm:$0xf] %v1407
      %1472 = vst [vmem:[#allocation3 + $0x34] sm:$0xf] %v1408
      %1473 = vst [vmem:[#allocation3 + $0x38] sm:$0xf] %v1409
      %1474 = vst [vmem:[#allocation3 + $0x3c] sm:$0xf] %v1410
      %1475 = vst [vmem:[#allocation3 + $0x40] sm:$0xf] %v1411
      %1476 = vst [vmem:[#allocation3 + $0x44] sm:$0xf] %v1412
      %1477 = vst [vmem:[#allocation3 + $0x48] sm:$0xf] %v1413
      %1478 = vst [vmem:[#allocation3 + $0x4c] sm:$0xf] %v1414
      %1479 = vst [vmem:[#allocation3 + $0x50] sm:$0xf] %v1415
      %1480 = vst [vmem:[#allocation3 + $0x54] sm:$0xf] %v1416
      %1481 = vst [vmem:[#allocation3 + $0x58] sm:$0xf] %v1417
      %1482 = vst [vmem:[#allocation3 + $0x5c] sm:$0xf] %v1418
      %1483 = vst [vmem:[#allocation3 + $0x60] sm:$0xf] %v1419
      %1484 = vst [vmem:[#allocation3 + $0x64] sm:$0xf] %v1420
      %1485 = vst [vmem:[#allocation3 + $0x68] sm:$0xf] %v1421
      %1486 = vst [vmem:[#allocation3 + $0x6c] sm:$0xf] %v1422
      %1487 = vst [vmem:[#allocation3 + $0x70] sm:$0xf] %v1423
      %1488 = vst [vmem:[#allocation3 + $0x74] sm:$0xf] %v1424
      %1489 = vst [vmem:[#allocation3 + $0x78] sm:$0xf] %v1425
      %1490 = vst [vmem:[#allocation3 + $0x7c] sm:$0xf] %v1426
      %1491 = vst [vmem:[#allocation3 + $0x80] sm:$0xf] %v1427
      %1492 = vst [vmem:[#allocation3 + $0x84] sm:$0xf] %v1428
      %1493 = vst [vmem:[#allocation3 + $0x88] sm:$0xf] %v1429
      %1494 = vst [vmem:[#allocation3 + $0x8c] sm:$0xf] %v1430
      %1495 = vst [vmem:[#allocation3 + $0x90] sm:$0xf] %v1431
      %1496 = vst [vmem:[#allocation3 + $0x94] sm:$0xf] %v1432
      %1497 = vst [vmem:[#allocation3 + $0x98] sm:$0xf] %v1433
      %1498 = vst [vmem:[#allocation3 + $0x9c] sm:$0xf] %v1434
      %1499 = vst [vmem:[#allocation3 + $0xa0] sm:$0xf] %v1435
      %1500 = vst [vmem:[#allocation3 + $0xa4] sm:$0xf] %v1436
      %1501 = vst [vmem:[#allocation3 + $0xa8] sm:$0xf] %v1437
      %1502 = vst [vmem:[#allocation3 + $0xac] sm:$0xf] %v1438
      %1503 = vst [vmem:[#allocation3 + $0xb0] sm:$0xf] %v1439
      %1504 = vst [vmem:[#allocation3 + $0xb4] sm:$0xf] %v1440
      %1505 = vst [vmem:[#allocation3 + $0xb8] sm:$0xf] %v1441
      %1506 = vst [vmem:[#allocation3 + $0xbc] sm:$0xf] %v1442
      %1507 = vst [vmem:[#allocation3 + $0xc0] sm:$0xf] %v1443
      %1508 = vst [vmem:[#allocation3 + $0xc4] sm:$0xf] %v1444
      %1509 = vst [vmem:[#allocation3 + $0xc8] sm:$0xf] %v1445
      %1510 = vst [vmem:[#allocation3 + $0xcc] sm:$0xf] %v1446
      %1511 = vst [vmem:[#allocation3 + $0xd0] sm:$0xf] %v1447
      %1512 = vst [vmem:[#allocation3 + $0xd4] sm:$0xf] %v1448
      %1513 = vst [vmem:[#allocation3 + $0xd8] sm:$0xf] %v1449
      %1514 = vst [vmem:[#allocation3 + $0xdc] sm:$0xf] %v1450
      %1515 = vst [vmem:[#allocation3 + $0xe0] sm:$0xf] %v1451
      %1516 = vst [vmem:[#allocation3 + $0xe4] sm:$0xf] %v1452
      %1517 = vst [vmem:[#allocation3 + $0xe8] sm:$0xf] %v1453
      %1518 = vst [vmem:[#allocation3 + $0xec] sm:$0xf] %v1454
      %1519 = vst [vmem:[#allocation3 + $0xf0] sm:$0xf] %v1455
      %1520 = vst [vmem:[#allocation3 + $0xf4] sm:$0xf] %v1456
      %1521 = vst [vmem:[#allocation3 + $0xf8] sm:$0xf] %v1457
      %1522 = vst [vmem:[#allocation3 + $0xfc] sm:$0xf] %v1458
    $region25: #{conv_bn.1} parent=1 // pred_fallthru
      _
    // Predicated region
    $region26: #{conv_bn.1} parent=1 // pred_check
      _
    $region27: #{conv_bn.1} parent=1 // pred_check_branch
      %1524 = sbr.rel (0) target = $region29
    $region28: #{conv_bn.1} parent=1 // pred_region
      %1526 = vsyncadd [#allocation4], 0
      %s1527 = sshll.u32 [#allocation3], 4
      %s1528 = int_to_ptr.vmem [resolvable:$true] %s1527
      %s1529 = sshll.u32 %s4, 4
      %s1530 = int_to_ptr.hbm [resolvable:$true] %s1529
      %1535 = dma.vmem_to_hbm [thread:$0]  %s1528, 4096, %s1530, [#allocation4], 64, 64, 4
    $region29: #{conv_bn.1} parent=1 // pred_fallthru
      _
    // Predicated region
    $region30: #{conv_bn.1} parent=1 // pred_check
      _
    $region31: #{conv_bn.1} parent=1 // pred_check_branch
      %1537 = sbr.rel (0) target = $region33
    $region32: #{conv_bn.1} parent=1 // pred_region
      %1539 = dma.done [#allocation4], 4096
    $region33: #{conv_bn.1} parent=1 // pred_fallthru
      _
    %1540 = vsyncpa [#allocation4], 1

</llo_original>
